<compile_context>
chip_gen: v6e
topology: v6e:2x2x1
jax: 0.10.0
libtpu: 0.0.40
codegen_flags: <defaults>
</compile_context>

<pallas_src>
import jax
import jax.numpy as jnp
from jax.experimental import pallas as pl
from jax.experimental.pallas import tpu as pltpu


# -----------------------------------------------------------------------------
# Fused kernel: STNPP -> QAL -> ProxyCodec (recon + bpp partials) -> task-head
# features + per-frame pooled partial sums.
# Grid: (frame, lane_chunk); all outputs indexed by the grid -> fully parallel.
# Data layout inside the kernel: (channels, LANE_TILE) — pixels on lanes.
# -----------------------------------------------------------------------------
def _fused_pipeline_kernel(qsc_ref, scale_ref, x_ref,
                           w1_ref, b1_ref, w2_ref, b2_ref,
                           we_ref, be_ref, wd_ref, bd_ref,
                           wt1_ref, bt1_ref,
                           recon_ref, pooled_ref, bpp_ref):
    x = x_ref[...]                                   # (C, LT) f32
    q = qsc_ref[0]                                   # SMEM scalar: qstep
    inv_q = qsc_ref[1]                               # SMEM scalar: 1/qstep

    # --- STNPP: pointwise conv -> ReLU -> pointwise conv + residual
    h = jnp.maximum(
        jnp.dot(w1_ref[...], x, preferred_element_type=jnp.float32) + b1_ref[...],
        0.0)                                         # (hidden, LT)
    pre = (jnp.dot(w2_ref[...], h, preferred_element_type=jnp.float32)
           + b2_ref[...] + x)                        # (C, LT)

    # --- QAL: QP-conditioned per-channel modulation (broadcast over lanes)
    mod = pre * scale_ref[...]                       # (C, 1) bcast

    # --- ProxyCodec encode + quantisation proxy (no divides in the hot path)
    lat = jnp.maximum(
        jnp.dot(we_ref[...], mod, preferred_element_type=jnp.float32) + be_ref[...],
        0.0)                                         # (hidden, LT)
    lat_int = jnp.round(lat * inv_q)                 # integer level
    lat_q = lat_int * q                              # dequantised latent

    # --- ProxyCodec decode
    recon = (jnp.dot(wd_ref[...], lat_q, preferred_element_type=jnp.float32)
             + bd_ref[...])                          # (C, LT)
    recon_ref[...] = recon

    # --- bits-per-pixel: per-lane partial sums (lane-dense store; cross-lane
    #     reduction deferred to the wrapper -> better f32 accuracy, no per-tile
    #     masked 1-element store, no carried accumulator).
    bits = jnp.log2(1.0 + jnp.abs(lat_int))          # (hidden, LT)
    bpp_ref[...] = jnp.sum(bits, axis=0, keepdims=True)          # (1, LT)

    # --- fused task head: features on the just-produced recon tile,
    #     per-frame pooled partial sums (finalised by a tiny follow-up matmul).
    feat = jnp.maximum(
        jnp.dot(wt1_ref[...], recon, preferred_element_type=jnp.float32)
        + bt1_ref[...], 0.0)                         # (hidden, LT)
    pooled_ref[...] = jnp.sum(feat, axis=1, keepdims=True)        # (hidden, 1)


# -----------------------------------------------------------------------------
# Tiny finalisation kernel: pooled per-frame features -> class logits.
# -----------------------------------------------------------------------------
def _logits_kernel(pooled_ref, wt2_ref, bt2_ref, out_ref):
    out_ref[...] = (jnp.dot(pooled_ref[...], wt2_ref[...],
                            preferred_element_type=jnp.float32) + bt2_ref[...])


def _pick_lane_tile(hw, max_tile=2048):
    """Largest multiple of 128 that divides hw, capped at max_tile."""
    if hw % 128 != 0:
        return hw                       # block == full array dim (allowed)
    t = min(max_tile, hw)
    t -= t % 128
    while t >= 128:
        if hw % t == 0:
            return t
        t -= 128
    return hw


# -----------------------------------------------------------------------------
# Wrapper
# -----------------------------------------------------------------------------
def task_aware_video_processor(frames, qp, params, *,
                               channels, hidden, time_steps, num_classes,
                               qp_levels=51):
    # Accept [B, T, C, H, W] or [B, C, T, H, W] like the PyTorch forward.
    if frames.shape[1] == channels and frames.shape[2] == time_steps:
        frames = jnp.transpose(frames, (0, 2, 1, 3, 4))
    B, T, C, H, W = frames.shape
    F = B * T
    HW = H * W
    N = F * HW                                        # pixel count

    # Channel-first, lane-dense layout — pure reshape, no transpose / HBM copy.
    x = frames.reshape(F, C, HW).astype(jnp.float32)

    # QP conditioning (tiny glue, stays in plain JAX).
    qp_n = jnp.float32(qp) / jnp.float32(qp_levels - 1 if qp_levels > 1 else 1)
    scale = jax.nn.sigmoid(qp_n * params['qal_w'] + params['qal_b']).reshape(C, 1)
    qstep = 1.0 + 4.0 * qp_n
    qsc = jnp.stack([qstep, 1.0 / qstep]).astype(jnp.float32)   # SMEM: [q, 1/q]

    LT = _pick_lane_tile(HW)
    assert HW % LT == 0, "pixel count per frame must be divisible by lane tile"
    NCHUNK = HW // LT
    grid = (F, NCHUNK)

    full2 = lambda f, p: (0, 0)

    recon, pooled_partials, bpp_partials = pl.pallas_call(
        _fused_pipeline_kernel,
        grid_spec=pltpu.PrefetchScalarGridSpec(
            num_scalar_prefetch=0,
            grid=grid,
            in_specs=[
                pl.BlockSpec(memory_space=pltpu.MemorySpace.SMEM),    # [q, 1/q]
                pl.BlockSpec((C, 1), full2),                          # scale
                pl.BlockSpec((None, C, LT), lambda f, p: (f, 0, p)),  # x tile
                pl.BlockSpec((hidden, C), full2),                     # w1
                pl.BlockSpec((hidden, 1), full2),                     # b1
                pl.BlockSpec((C, hidden), full2),                     # w2
                pl.BlockSpec((C, 1), full2),                          # b2
                pl.BlockSpec((hidden, C), full2),                     # we
                pl.BlockSpec((hidden, 1), full2),                     # be
                pl.BlockSpec((C, hidden), full2),                     # wd
                pl.BlockSpec((C, 1), full2),                          # bd
                pl.BlockSpec((hidden, C), full2),                     # wt1
                pl.BlockSpec((hidden, 1), full2),                     # bt1
            ],
            out_specs=[
                pl.BlockSpec((None, C, LT), lambda f, p: (f, 0, p)),          # recon
                pl.BlockSpec((None, None, hidden, 1), lambda f, p: (f, p, 0, 0)),  # pooled partials
                pl.BlockSpec((None, None, 1, LT), lambda f, p: (f, p, 0, 0)),      # bpp partials
            ],
        ),
        out_shape=[
            jax.ShapeDtypeStruct((F, C, HW), jnp.float32),
            jax.ShapeDtypeStruct((F, NCHUNK, hidden, 1), jnp.float32),
            jax.ShapeDtypeStruct((F, NCHUNK, 1, LT), jnp.float32),
        ],
        compiler_params=pltpu.CompilerParams(
            dimension_semantics=("parallel", "parallel")),
    )(qsc, scale, x,
      params['w1'], params['b1'], params['w2'], params['b2'],
      params['we'], params['be'], params['wd'], params['bd'],
      params['wt1'], params['bt1'])

    # Tiny host-side reductions of the per-tile partials (hierarchical -> good
    # f32 accuracy even for large N).
    bpp = jnp.sum(bpp_partials) / jnp.float32(N)
    pooled = jnp.sum(pooled_partials, axis=1)[..., 0] / jnp.float32(HW)   # (F, hidden)

    # Task head finalisation: per-frame class logits (tiny, single block).
    logits = pl.pallas_call(
        _logits_kernel,
        grid_spec=pltpu.PrefetchScalarGridSpec(
            num_scalar_prefetch=0,
            grid=(1,),
            in_specs=[
                pl.BlockSpec((F, hidden), lambda i: (0, 0)),
                pl.BlockSpec((hidden, num_classes), lambda i: (0, 0)),
                pl.BlockSpec((1, num_classes), lambda i: (0, 0)),
            ],
            out_specs=pl.BlockSpec((F, num_classes), lambda i: (0, 0)),
        ),
        out_shape=jax.ShapeDtypeStruct((F, num_classes), jnp.float32),
    )(pooled, params['wt2'], params['bt2'])

    reconstructed = recon.reshape(B, T, C, H, W)      # pure reshape (no transpose)
    task_output = logits.reshape(B, T, num_classes)
    return {'reconstructed': reconstructed, 'task_output': task_output, 'bpp': bpp}


# -----------------------------------------------------------------------------
# Deterministic parameter initialisation (kaiming-normal like, zero biases).
# Weights stored as (out_ch, in_ch) for left-multiply w @ x (lane-dense layout);
# biases as column vectors broadcasting over the lane (pixel) axis.
# -----------------------------------------------------------------------------
def init_params(key, channels, hidden, num_classes):
    ks = jax.random.split(key, 8)

    def kaiming(k, shape, fan_out):
        return (jax.random.normal(k, shape, jnp.float32)
                * jnp.sqrt(2.0 / jnp.float32(fan_out)))

    return {
        # STNPP
        'w1': kaiming(ks[0], (hidden, channels), hidden),
        'b1': jnp.zeros((hidden, 1), jnp.float32),
        'w2': kaiming(ks[1], (channels, hidden), channels),
        'b2': jnp.zeros((channels, 1), jnp.float32),
        # QAL
        'qal_w': jax.random.normal(ks[2], (channels,), jnp.float32),
        'qal_b': jnp.zeros((channels,), jnp.float32),
        # ProxyCodec
        'we': kaiming(ks[3], (hidden, channels), hidden),
        'be': jnp.zeros((hidden, 1), jnp.float32),
        'wd': kaiming(ks[4], (channels, hidden), channels),
        'bd': jnp.zeros((channels, 1), jnp.float32),
        # Task head (detection)
        'wt1': kaiming(ks[5], (hidden, channels), hidden),
        'bt1': jnp.zeros((hidden, 1), jnp.float32),
        'wt2': kaiming(ks[6], (hidden, num_classes), num_classes),
        'bt2': jnp.zeros((1, num_classes), jnp.float32),
    }


if __name__ == "__main__":
    key = jax.random.PRNGKey(0)
    k_param, k_data = jax.random.split(key)

    B, T, C, H, W = 2, 4, 3, 16, 16
    hidden, num_classes = 32, 8

    params = init_params(k_param, C, hidden, num_classes)
    frames = jax.random.normal(k_data, (B, T, C, H, W), jnp.float32)
    qp = 30.0

    out = task_aware_video_processor(
        frames, qp, params,
        channels=C, hidden=hidden, time_steps=T, num_classes=num_classes)
    jax.block_until_ready(out)

    assert out['reconstructed'].shape == (B, T, C, H, W)
    assert out['task_output'].shape == (B, T, num_classes)
    assert out['bpp'].shape == ()
    print("KERNEL_OK")
</pallas_src>

<mosaic_0001>
module attributes {stable_mosaic.version = 11 : i64} {
  func.func @_fused_pipeline_kernel(%arg0: i32, %arg1: i32, %arg2: memref<2xf32, #tpu.memory_space<smem>>, %arg3: memref<3x1xf32, #tpu.memory_space<vmem>>, %arg4: memref<1x3x256xf32, #tpu.memory_space<vmem>>, %arg5: memref<32x3xf32, #tpu.memory_space<vmem>>, %arg6: memref<32x1xf32, #tpu.memory_space<vmem>>, %arg7: memref<3x32xf32, #tpu.memory_space<vmem>>, %arg8: memref<3x1xf32, #tpu.memory_space<vmem>>, %arg9: memref<32x3xf32, #tpu.memory_space<vmem>>, %arg10: memref<32x1xf32, #tpu.memory_space<vmem>>, %arg11: memref<3x32xf32, #tpu.memory_space<vmem>>, %arg12: memref<3x1xf32, #tpu.memory_space<vmem>>, %arg13: memref<32x3xf32, #tpu.memory_space<vmem>>, %arg14: memref<32x1xf32, #tpu.memory_space<vmem>>, %arg15: memref<1x3x256xf32, #tpu.memory_space<vmem>>, %arg16: memref<1x1x32x1xf32, #tpu.memory_space<vmem>>, %arg17: memref<1x1x1x256xf32, #tpu.memory_space<vmem>>) attributes {dimension_semantics = [#tpu.dimension_semantics<parallel>, #tpu.dimension_semantics<parallel>], iteration_bounds = array<i64: 8, 1>, scalar_prefetch = 0 : i64, scratch_operands = 0 : i64, tpu.core_type = #tpu.core_type<tc>, window_params = [{transform_indices = @transform_0, window_bounds = array<i64: 2>}, {pipeline_mode = #tpu.pipeline_mode<synchronous>, transform_indices = @transform_1, window_bounds = array<i64: 3, 1>}, {transform_indices = @transform_2, window_bounds = array<i64: 1, 3, 256>}, {pipeline_mode = #tpu.pipeline_mode<synchronous>, transform_indices = @transform_3, window_bounds = array<i64: 32, 3>}, {pipeline_mode = #tpu.pipeline_mode<synchronous>, transform_indices = @transform_4, window_bounds = array<i64: 32, 1>}, {pipeline_mode = #tpu.pipeline_mode<synchronous>, transform_indices = @transform_5, window_bounds = array<i64: 3, 32>}, {pipeline_mode = #tpu.pipeline_mode<synchronous>, transform_indices = @transform_6, window_bounds = array<i64: 3, 1>}, {pipeline_mode = #tpu.pipeline_mode<synchronous>, transform_indices = @transform_7, window_bounds = array<i64: 32, 3>}, {pipeline_mode = #tpu.pipeline_mode<synchronous>, transform_indices = @transform_8, window_bounds = array<i64: 32, 1>}, {pipeline_mode = #tpu.pipeline_mode<synchronous>, transform_indices = @transform_9, window_bounds = array<i64: 3, 32>}, {pipeline_mode = #tpu.pipeline_mode<synchronous>, transform_indices = @transform_10, window_bounds = array<i64: 3, 1>}, {pipeline_mode = #tpu.pipeline_mode<synchronous>, transform_indices = @transform_11, window_bounds = array<i64: 32, 3>}, {pipeline_mode = #tpu.pipeline_mode<synchronous>, transform_indices = @transform_12, window_bounds = array<i64: 32, 1>}, {transform_indices = @transform_13, window_bounds = array<i64: 1, 3, 256>}, {transform_indices = @transform_14, window_bounds = array<i64: 1, 1, 32, 1>}, {transform_indices = @transform_15, window_bounds = array<i64: 1, 1, 1, 256>}]} {
    %c0 = arith.constant 0 : index
    %c0_0 = arith.constant 0 : index
    %c0_1 = arith.constant 0 : index
    %0 = vector.load %arg4[%c0, %c0_0, %c0_1] : memref<1x3x256xf32, #tpu.memory_space<vmem>>, vector<1x3x256xf32>
    %1 = vector.shape_cast %0 : vector<1x3x256xf32> to vector<3x256xf32>
    %c0_2 = arith.constant 0 : index
    %2 = memref.load %arg2[%c0_2] : memref<2xf32, #tpu.memory_space<smem>>
    %c1 = arith.constant 1 : index
    %3 = memref.load %arg2[%c1] : memref<2xf32, #tpu.memory_space<smem>>
    %c0_3 = arith.constant 0 : index
    %c0_4 = arith.constant 0 : index
    %4 = vector.load %arg5[%c0_3, %c0_4] : memref<32x3xf32, #tpu.memory_space<vmem>>, vector<32x3xf32>
    %cst = arith.constant dense<0.000000e+00> : vector<32x256xf32>
    %5 = tpu.matmul %4, %1, %cst {dimension_numbers = #tpu.dot_dimension_numbers<[1], [0], [0], [1], [0, 0, 1, 1], [], []>} : vector<32x3xf32>, vector<3x256xf32>, vector<32x256xf32> -> vector<32x256xf32>
    %c0_5 = arith.constant 0 : index
    %c0_6 = arith.constant 0 : index
    %6 = vector.load %arg6[%c0_5, %c0_6] : memref<32x1xf32, #tpu.memory_space<vmem>>, vector<32x1xf32>
    %7 = vector.broadcast %6 : vector<32x1xf32> to vector<32x256xf32>
    %8 = arith.addf %5, %7 : vector<32x256xf32>
    %cst_7 = arith.constant 0.000000e+00 : f32
    %9 = vector.broadcast %cst_7 : f32 to vector<32x256xf32>
    %10 = arith.maximumf %8, %9 : vector<32x256xf32>
    %c0_8 = arith.constant 0 : index
    %c0_9 = arith.constant 0 : index
    %11 = vector.load %arg7[%c0_8, %c0_9] : memref<3x32xf32, #tpu.memory_space<vmem>>, vector<3x32xf32>
    %cst_10 = arith.constant dense<0.000000e+00> : vector<3x256xf32>
    %12 = tpu.matmul %11, %10, %cst_10 {dimension_numbers = #tpu.dot_dimension_numbers<[1], [0], [0], [1], [0, 0, 1, 1], [], []>} : vector<3x32xf32>, vector<32x256xf32>, vector<3x256xf32> -> vector<3x256xf32>
    %c0_11 = arith.constant 0 : index
    %c0_12 = arith.constant 0 : index
    %13 = vector.load %arg8[%c0_11, %c0_12] : memref<3x1xf32, #tpu.memory_space<vmem>>, vector<3x1xf32>
    %14 = vector.broadcast %13 : vector<3x1xf32> to vector<3x256xf32>
    %15 = arith.addf %12, %14 : vector<3x256xf32>
    %16 = arith.addf %15, %1 : vector<3x256xf32>
    %c0_13 = arith.constant 0 : index
    %c0_14 = arith.constant 0 : index
    %17 = vector.load %arg3[%c0_13, %c0_14] : memref<3x1xf32, #tpu.memory_space<vmem>>, vector<3x1xf32>
    %18 = vector.broadcast %17 : vector<3x1xf32> to vector<3x256xf32>
    %19 = arith.mulf %16, %18 : vector<3x256xf32>
    %c0_15 = arith.constant 0 : index
    %c0_16 = arith.constant 0 : index
    %20 = vector.load %arg9[%c0_15, %c0_16] : memref<32x3xf32, #tpu.memory_space<vmem>>, vector<32x3xf32>
    %cst_17 = arith.constant dense<0.000000e+00> : vector<32x256xf32>
    %21 = tpu.matmul %20, %19, %cst_17 {dimension_numbers = #tpu.dot_dimension_numbers<[1], [0], [0], [1], [0, 0, 1, 1], [], []>} : vector<32x3xf32>, vector<3x256xf32>, vector<32x256xf32> -> vector<32x256xf32>
    %c0_18 = arith.constant 0 : index
    %c0_19 = arith.constant 0 : index
    %22 = vector.load %arg10[%c0_18, %c0_19] : memref<32x1xf32, #tpu.memory_space<vmem>>, vector<32x1xf32>
    %23 = vector.broadcast %22 : vector<32x1xf32> to vector<32x256xf32>
    %24 = arith.addf %21, %23 : vector<32x256xf32>
    %cst_20 = arith.constant 0.000000e+00 : f32
    %25 = vector.broadcast %cst_20 : f32 to vector<32x256xf32>
    %26 = arith.maximumf %24, %25 : vector<32x256xf32>
    %27 = vector.broadcast %3 : f32 to vector<32x256xf32>
    %28 = arith.mulf %26, %27 : vector<32x256xf32>
    %29 = math.roundeven %28 : vector<32x256xf32>
    %30 = vector.broadcast %2 : f32 to vector<32x256xf32>
    %31 = arith.mulf %29, %30 : vector<32x256xf32>
    %c0_21 = arith.constant 0 : index
    %c0_22 = arith.constant 0 : index
    %32 = vector.load %arg11[%c0_21, %c0_22] : memref<3x32xf32, #tpu.memory_space<vmem>>, vector<3x32xf32>
    %cst_23 = arith.constant dense<0.000000e+00> : vector<3x256xf32>
    %33 = tpu.matmul %32, %31, %cst_23 {dimension_numbers = #tpu.dot_dimension_numbers<[1], [0], [0], [1], [0, 0, 1, 1], [], []>} : vector<3x32xf32>, vector<32x256xf32>, vector<3x256xf32> -> vector<3x256xf32>
    %c0_24 = arith.constant 0 : index
    %c0_25 = arith.constant 0 : index
    %34 = vector.load %arg12[%c0_24, %c0_25] : memref<3x1xf32, #tpu.memory_space<vmem>>, vector<3x1xf32>
    %35 = vector.broadcast %34 : vector<3x1xf32> to vector<3x256xf32>
    %36 = arith.addf %33, %35 : vector<3x256xf32>
    %c0_26 = arith.constant 0 : index
    %c0_27 = arith.constant 0 : index
    %c0_28 = arith.constant 0 : index
    %37 = vector.load %arg15[%c0_26, %c0_27, %c0_28] : memref<1x3x256xf32, #tpu.memory_space<vmem>>, vector<1x3x256xf32>
    %38 = vector.shape_cast %37 : vector<1x3x256xf32> to vector<3x256xf32>
    %39 = vector.shape_cast %36 : vector<3x256xf32> to vector<1x3x256xf32>
    tpu.vector_store %arg15[%c0_26, %c0_27, %c0_28], %39 {strides = array<i32>} : memref<1x3x256xf32, #tpu.memory_space<vmem>>, vector<1x3x256xf32>,
    %40 = math.absf %29 : vector<32x256xf32>
    %cst_29 = arith.constant 1.000000e+00 : f32
    %41 = vector.broadcast %cst_29 : f32 to vector<32x256xf32>
    %42 = arith.addf %41, %40 : vector<32x256xf32>
    %43 = math.log %42 : vector<32x256xf32>
    %cst_30 = arith.constant 2.000000e+00 : f32
    %44 = math.log %cst_30 : f32
    %45 = vector.broadcast %44 : f32 to vector<32x256xf32>
    %46 = arith.divf %43, %45 : vector<32x256xf32>
    %cst_31 = arith.constant dense<0.000000e+00> : vector<256xf32>
    %47 = vector.multi_reduction <add>, %46, %cst_31 [0] : vector<32x256xf32> to vector<256xf32>
    %48 = vector.shape_cast %47 : vector<256xf32> to vector<1x256xf32>
    %c0_32 = arith.constant 0 : index
    %c0_33 = arith.constant 0 : index
    %c0_34 = arith.constant 0 : index
    %c0_35 = arith.constant 0 : index
    %49 = vector.load %arg17[%c0_32, %c0_33, %c0_34, %c0_35] : memref<1x1x1x256xf32, #tpu.memory_space<vmem>>, vector<1x1x1x256xf32>
    %50 = vector.shape_cast %49 : vector<1x1x1x256xf32> to vector<1x256xf32>
    %51 = vector.shape_cast %48 : vector<1x256xf32> to vector<1x1x1x256xf32>
    tpu.vector_store %arg17[%c0_32, %c0_33, %c0_34, %c0_35], %51 {strides = array<i32>} : memref<1x1x1x256xf32, #tpu.memory_space<vmem>>, vector<1x1x1x256xf32>,
    %c0_36 = arith.constant 0 : index
    %c0_37 = arith.constant 0 : index
    %52 = vector.load %arg13[%c0_36, %c0_37] : memref<32x3xf32, #tpu.memory_space<vmem>>, vector<32x3xf32>
    %cst_38 = arith.constant dense<0.000000e+00> : vector<32x256xf32>
    %53 = tpu.matmul %52, %36, %cst_38 {dimension_numbers = #tpu.dot_dimension_numbers<[1], [0], [0], [1], [0, 0, 1, 1], [], []>} : vector<32x3xf32>, vector<3x256xf32>, vector<32x256xf32> -> vector<32x256xf32>
    %c0_39 = arith.constant 0 : index
    %c0_40 = arith.constant 0 : index
    %54 = vector.load %arg14[%c0_39, %c0_40] : memref<32x1xf32, #tpu.memory_space<vmem>>, vector<32x1xf32>
    %55 = vector.broadcast %54 : vector<32x1xf32> to vector<32x256xf32>
    %56 = arith.addf %53, %55 : vector<32x256xf32>
    %cst_41 = arith.constant 0.000000e+00 : f32
    %57 = vector.broadcast %cst_41 : f32 to vector<32x256xf32>
    %58 = arith.maximumf %56, %57 : vector<32x256xf32>
    %cst_42 = arith.constant dense<0.000000e+00> : vector<32xf32>
    %59 = vector.multi_reduction <add>, %58, %cst_42 [1] : vector<32x256xf32> to vector<32xf32>
    %60 = vector.shape_cast %59 : vector<32xf32> to vector<32x1xf32>
    %c0_43 = arith.constant 0 : index
    %c0_44 = arith.constant 0 : index
    %c0_45 = arith.constant 0 : index
    %c0_46 = arith.constant 0 : index
    %61 = vector.load %arg16[%c0_43, %c0_44, %c0_45, %c0_46] : memref<1x1x32x1xf32, #tpu.memory_space<vmem>>, vector<1x1x32x1xf32>
    %62 = vector.shape_cast %61 : vector<1x1x32x1xf32> to vector<32x1xf32>
    %63 = vector.shape_cast %60 : vector<32x1xf32> to vector<1x1x32x1xf32>
    tpu.vector_store %arg16[%c0_43, %c0_44, %c0_45, %c0_46], %63 {strides = array<i32>} : memref<1x1x32x1xf32, #tpu.memory_space<vmem>>, vector<1x1x32x1xf32>,
    return
  }
  func.func @transform_0(%arg0: i32, %arg1: i32) -> i32 {
    %c0_i32 = arith.constant 0 : i32
    %c0_i32_0 = arith.constant 0 : i32
    return %c0_i32 : i32
  }
  func.func @transform_1(%arg0: i32, %arg1: i32) -> (i32, i32) {
    %c0_i32 = arith.constant 0 : i32
    %c0_i32_0 = arith.constant 0 : i32
    %c0_i32_1 = arith.constant 0 : i32
    return %c0_i32, %c0_i32_0 : i32, i32
  }
  func.func @transform_2(%arg0: i32, %arg1: i32) -> (i32, i32, i32) {
    %c0_i32 = arith.constant 0 : i32
    %c0_i32_0 = arith.constant 0 : i32
    return %arg0, %c0_i32, %arg1 : i32, i32, i32
  }
  func.func @transform_3(%arg0: i32, %arg1: i32) -> (i32, i32) {
    %c0_i32 = arith.constant 0 : i32
    %c0_i32_0 = arith.constant 0 : i32
    %c0_i32_1 = arith.constant 0 : i32
    return %c0_i32, %c0_i32_0 : i32, i32
  }
  func.func @transform_4(%arg0: i32, %arg1: i32) -> (i32, i32) {
    %c0_i32 = arith.constant 0 : i32
    %c0_i32_0 = arith.constant 0 : i32
    %c0_i32_1 = arith.constant 0 : i32
    return %c0_i32, %c0_i32_0 : i32, i32
  }
  func.func @transform_5(%arg0: i32, %arg1: i32) -> (i32, i32) {
    %c0_i32 = arith.constant 0 : i32
    %c0_i32_0 = arith.constant 0 : i32
    %c0_i32_1 = arith.constant 0 : i32
    return %c0_i32, %c0_i32_0 : i32, i32
  }
  func.func @transform_6(%arg0: i32, %arg1: i32) -> (i32, i32) {
    %c0_i32 = arith.constant 0 : i32
    %c0_i32_0 = arith.constant 0 : i32
    %c0_i32_1 = arith.constant 0 : i32
    return %c0_i32, %c0_i32_0 : i32, i32
  }
  func.func @transform_7(%arg0: i32, %arg1: i32) -> (i32, i32) {
    %c0_i32 = arith.constant 0 : i32
    %c0_i32_0 = arith.constant 0 : i32
    %c0_i32_1 = arith.constant 0 : i32
    return %c0_i32, %c0_i32_0 : i32, i32
  }
  func.func @transform_8(%arg0: i32, %arg1: i32) -> (i32, i32) {
    %c0_i32 = arith.constant 0 : i32
    %c0_i32_0 = arith.constant 0 : i32
    %c0_i32_1 = arith.constant 0 : i32
    return %c0_i32, %c0_i32_0 : i32, i32
  }
  func.func @transform_9(%arg0: i32, %arg1: i32) -> (i32, i32) {
    %c0_i32 = arith.constant 0 : i32
    %c0_i32_0 = arith.constant 0 : i32
    %c0_i32_1 = arith.constant 0 : i32
    return %c0_i32, %c0_i32_0 : i32, i32
  }
  func.func @transform_10(%arg0: i32, %arg1: i32) -> (i32, i32) {
    %c0_i32 = arith.constant 0 : i32
    %c0_i32_0 = arith.constant 0 : i32
    %c0_i32_1 = arith.constant 0 : i32
    return %c0_i32, %c0_i32_0 : i32, i32
  }
  func.func @transform_11(%arg0: i32, %arg1: i32) -> (i32, i32) {
    %c0_i32 = arith.constant 0 : i32
    %c0_i32_0 = arith.constant 0 : i32
    %c0_i32_1 = arith.constant 0 : i32
    return %c0_i32, %c0_i32_0 : i32, i32
  }
  func.func @transform_12(%arg0: i32, %arg1: i32) -> (i32, i32) {
    %c0_i32 = arith.constant 0 : i32
    %c0_i32_0 = arith.constant 0 : i32
    %c0_i32_1 = arith.constant 0 : i32
    return %c0_i32, %c0_i32_0 : i32, i32
  }
  func.func @transform_13(%arg0: i32, %arg1: i32) -> (i32, i32, i32) {
    %c0_i32 = arith.constant 0 : i32
    %c0_i32_0 = arith.constant 0 : i32
    return %arg0, %c0_i32, %arg1 : i32, i32, i32
  }
  func.func @transform_14(%arg0: i32, %arg1: i32) -> (i32, i32, i32, i32) {
    %c0_i32 = arith.constant 0 : i32
    %c0_i32_0 = arith.constant 0 : i32
    %c0_i32_1 = arith.constant 0 : i32
    return %arg0, %arg1, %c0_i32, %c0_i32_0 : i32, i32, i32, i32
  }
  func.func @transform_15(%arg0: i32, %arg1: i32) -> (i32, i32, i32, i32) {
    %c0_i32 = arith.constant 0 : i32
    %c0_i32_0 = arith.constant 0 : i32
    %c0_i32_1 = arith.constant 0 : i32
    return %arg0, %arg1, %c0_i32, %c0_i32_0 : i32, i32, i32, i32
  }
}

</mosaic_0001>

<llo_original>
// kernel: tpu_custom_call.1
$region0: #{tpu_custom_call.1}
  #allocation0 [shape = 'u32[]', space=smem, size = 0x4, offset = 0x4, fixed_abs, tag = 'smem constant byte address 0x4 - core index']
  #allocation1 [shape = 'u32[144,128]{1,0:T(1,128)}', space=vmem, size = 0x12000, scoped, tag = 'internal scratch']
  %s0 = inlined_call_operand.vmem [shape: f32[2], index: 0, kind: input, shape index: {}]
  %s1 = inlined_call_operand.vmem [shape: f32[3,1], index: 1, kind: input, shape index: {}]
  %s2 = inlined_call_operand.vmem [shape: f32[8,3,256], index: 2, kind: input, shape index: {}]
  %s3 = inlined_call_operand.vmem [shape: f32[32,3], index: 3, kind: input, shape index: {}]
  %s4 = inlined_call_operand.vmem [shape: f32[32,1], index: 4, kind: input, shape index: {}]
  %s5 = inlined_call_operand.vmem [shape: f32[3,32], index: 5, kind: input, shape index: {}]
  %s6 = inlined_call_operand.vmem [shape: f32[3,1], index: 6, kind: input, shape index: {}]
  %s7 = inlined_call_operand.vmem [shape: f32[32,3], index: 7, kind: input, shape index: {}]
  %s8 = inlined_call_operand.vmem [shape: f32[32,1], index: 8, kind: input, shape index: {}]
  %s9 = inlined_call_operand.vmem [shape: f32[3,32], index: 9, kind: input, shape index: {}]
  %s10 = inlined_call_operand.vmem [shape: f32[3,1], index: 10, kind: input, shape index: {}]
  %s11 = inlined_call_operand.vmem [shape: f32[32,3], index: 11, kind: input, shape index: {}]
  %s12 = inlined_call_operand.vmem [shape: f32[32,1], index: 12, kind: input, shape index: {}]
  %s13 = inlined_call_operand.vmem [shape: f32[8,3,256], index: 13, kind: output, shape index: {0}]
  %s14 = inlined_call_operand.vmem [shape: f32[8,1,32,1], index: 14, kind: output, shape index: {1}]
  %s15 = inlined_call_operand.hbm [shape: f32[8,1,1,256], index: 15, kind: output, shape index: {2}]
  %16 = xla_tuple %s13, %s14, %s15
  %s17 = sld [smem:[#allocation0]]
  $region105: #{tpu_custom_call.1} parent=0
    _
  %s19 = ssub.s32 1, %s17
  %s20 = scalar_select 0, %s19, %s17
  $region1: #{tpu_custom_call.1} parent=0
    #allocation2 [shape = 'u8[512]{0}', space=smem, size = 0x200, scoped, tag = 'input window, operand 0, single buffered']
    #allocation3 [shape = 's32[2]{0}', space=sflag, size = 0x8, scoped, tag = 'scoped memory for tpu_custom_call.1']
    #allocation4 [shape = 's32[2]{0}', space=sflag, size = 0x8, scoped, tag = 'scoped memory for tpu_custom_call.1']
    #allocation5 [shape = 'u8[2048]{0}', space=vmem, size = 0x800, scoped, tag = 'output window, operand 2']
    %21 = vsyncpa [#allocation4], 0
    %22 = vsyncpa [#allocation3], 0
    %s23 = scalar_lea.sflag [#allocation3], 1
    %24 = vsyncpa %s23, 0
    loop: start=0, step=1, limit=10
    $region2: #{tpu_custom_call.1} parent=1 // loop_pre_header
      _
    $region3: #{tpu_custom_call.1} parent=1 // loop_header
      %s26 = sphi 0, %s30
      %p27 = scmp.ge.s32.totalorder %s26, 10
      %s33 = sphi 0, %s45
      %s34 = sphi 0, %s41
      %s35 = sphi 0, %s33
      %s36 = sphi 0, %s34
      %s37 = sphi 0, %s35
      %s38 = sphi 0, %s36
      %s46 = sphi 0, %s46
      %s48 = sphi 0, %s46
      %s49 = sphi 0, %s48
      %s63 = sphi 0, %s49
      %s67 = sphi 0, %s67
      %s69 = sphi 0, %s67
      %s70 = sphi 0, %s69
      %s84 = sphi 0, %s70
      %s92 = sphi 0, %s94
      %s95 = sphi 0, %s92
      %s96 = sphi 0, %s95
      %s112 = sphi 0, %s96
      %s116 = sphi 0, %s116
      %s118 = sphi 0, %s116
      %s119 = sphi 0, %s118
      %s133 = sphi 0, %s119
      %s137 = sphi 0, %s137
      %s139 = sphi 0, %s137
      %s140 = sphi 0, %s139
      %s154 = sphi 0, %s140
      %s158 = sphi 0, %s158
      %s160 = sphi 0, %s158
      %s161 = sphi 0, %s160
      %s175 = sphi 0, %s161
      %s179 = sphi 0, %s179
      %s181 = sphi 0, %s179
      %s182 = sphi 0, %s181
      %s196 = sphi 0, %s182
      %s200 = sphi 0, %s200
      %s202 = sphi 0, %s200
      %s203 = sphi 0, %s202
      %s217 = sphi 0, %s203
      %s221 = sphi 0, %s221
      %s223 = sphi 0, %s221
      %s224 = sphi 0, %s223
      %s238 = sphi 0, %s224
      %s242 = sphi 0, %s242
      %s244 = sphi 0, %s242
      %s245 = sphi 0, %s244
      %s259 = sphi 0, %s245
      %s263 = sphi 0, %s263
      %s265 = sphi 0, %s263
      %s266 = sphi 0, %s265
      %s280 = sphi 0, %s266
      %s284 = sphi 0, %s284
      %s286 = sphi 0, %s284
      %s287 = sphi 0, %s286
      %s301 = sphi 0, %s287
      %s305 = sphi 0, %s305
      %s307 = sphi 0, %s305
      %s308 = sphi 0, %s307
      %s322 = sphi 0, %s308
      %s330 = sphi 0, %s332
      %s333 = sphi 0, %s330
      %s334 = sphi 0, %s333
      %s350 = sphi 0, %s334
      %s358 = sphi 0, %s360
      %s361 = sphi 0, %s358
      %s362 = sphi 0, %s361
      %s378 = sphi 0, %s362
      %s386 = sphi 0, %s388
      %s389 = sphi 0, %s386
      %s390 = sphi 0, %s389
      %s406 = sphi 0, %s390
    $region4: #{tpu_custom_call.1} parent=1 // loop_header_branch
      %29 = sbr.rel (%p27) target = $region8
    $region5: #{tpu_custom_call.1} parent=1 // loop_body
      %s31 = ssub.s32 %s26, 1
      %s32 = ssub.s32 %s26, 2
      %s39 = sadd.s32 1, %s34
      %p40 = scmp.ge.s32.totalorder %s39, 1
      %s41 = scalar_select %p40, 0, %s39
      %s42 = sadd.s32 1, %s33
      %s43 = scalar_select %p40, %s42, %s33
      %p44 = scmp.ge.s32.totalorder %s43, 8
      %s45 = scalar_select %p44, 0, %s43
      %s47 = sadd.s32 %s46, 1
      %p50 = scmp.eq.s32.totalorder %s26, 7
      %p51 = scmp.ne.s32.totalorder %s46, %s48
      %p52 = scmp.eq.s32.totalorder %s26, 0
      %p53 = por %p51, %p52
      %p54 = scmp.ne.s32.totalorder %s46, %s48
      %p55 = scmp.eq.s32.totalorder %s31, 7
      %p56 = por %p54, %p55
      %p57 = scmp.ne.s32.totalorder %s48, %s49
      %p58 = scmp.eq.s32.totalorder %s31, 0
      %p59 = por %p57, %p58
      %p60 = scmp.ne.s32.totalorder %s48, %s49
      %p61 = scmp.eq.s32.totalorder %s32, 7
      %p62 = por %p60, %p61
      %p64 = scmp.ne.s32.totalorder %s49, %s63
      %p65 = scmp.eq.s32.totalorder %s32, 0
      %p66 = por %p64, %p65
      %s68 = sadd.s32 %s67, 1
      %p71 = scmp.eq.s32.totalorder %s26, 7
      %p72 = scmp.ne.s32.totalorder %s67, %s69
      %p73 = scmp.eq.s32.totalorder %s26, 0
      %p74 = por %p72, %p73
      %p75 = scmp.ne.s32.totalorder %s67, %s69
      %p76 = scmp.eq.s32.totalorder %s31, 7
      %p77 = por %p75, %p76
      %p78 = scmp.ne.s32.totalorder %s69, %s70
      %p79 = scmp.eq.s32.totalorder %s31, 0
      %p80 = por %p78, %p79
      %p81 = scmp.ne.s32.totalorder %s69, %s70
      %p82 = scmp.eq.s32.totalorder %s32, 7
      %p83 = por %p81, %p82
      %p85 = scmp.ne.s32.totalorder %s70, %s84
      %p86 = scmp.eq.s32.totalorder %s32, 0
      %p87 = por %p85, %p86
      %s88 = ssub.s32 %s33, %s45
      %s89 = ssub.s32 %s34, %s41
      %s90 = sor.u32 %s88, %s89
      %p91 = scmp.eq.s32.totalorder %s90, 0
      %s93 = sadd.s32 %s92, 1
      %s94 = scalar_select %p91, %s92, %s93
      %p97 = pneg %p91
      %p98 = scmp.eq.s32.totalorder %s26, 7
      %p99 = por %p97, %p98
      %p100 = scmp.ne.s32.totalorder %s92, %s95
      %p101 = scmp.eq.s32.totalorder %s26, 0
      %p102 = por %p100, %p101
      %p103 = scmp.ne.s32.totalorder %s92, %s95
      %p104 = scmp.eq.s32.totalorder %s31, 7
      %p105 = por %p103, %p104
      %p106 = scmp.ne.s32.totalorder %s95, %s96
      %p107 = scmp.eq.s32.totalorder %s31, 0
      %p108 = por %p106, %p107
      %p109 = scmp.ne.s32.totalorder %s95, %s96
      %p110 = scmp.eq.s32.totalorder %s32, 7
      %p111 = por %p109, %p110
      %p113 = scmp.ne.s32.totalorder %s96, %s112
      %p114 = scmp.eq.s32.totalorder %s32, 0
      %p115 = por %p113, %p114
      %s117 = sadd.s32 %s116, 1
      %p120 = scmp.eq.s32.totalorder %s26, 7
      %p121 = scmp.ne.s32.totalorder %s116, %s118
      %p122 = scmp.eq.s32.totalorder %s26, 0
      %p123 = por %p121, %p122
      %p124 = scmp.ne.s32.totalorder %s116, %s118
      %p125 = scmp.eq.s32.totalorder %s31, 7
      %p126 = por %p124, %p125
      %p127 = scmp.ne.s32.totalorder %s118, %s119
      %p128 = scmp.eq.s32.totalorder %s31, 0
      %p129 = por %p127, %p128
      %p130 = scmp.ne.s32.totalorder %s118, %s119
      %p131 = scmp.eq.s32.totalorder %s32, 7
      %p132 = por %p130, %p131
      %p134 = scmp.ne.s32.totalorder %s119, %s133
      %p135 = scmp.eq.s32.totalorder %s32, 0
      %p136 = por %p134, %p135
      %s138 = sadd.s32 %s137, 1
      %p141 = scmp.eq.s32.totalorder %s26, 7
      %p142 = scmp.ne.s32.totalorder %s137, %s139
      %p143 = scmp.eq.s32.totalorder %s26, 0
      %p144 = por %p142, %p143
      %p145 = scmp.ne.s32.totalorder %s137, %s139
      %p146 = scmp.eq.s32.totalorder %s31, 7
      %p147 = por %p145, %p146
      %p148 = scmp.ne.s32.totalorder %s139, %s140
      %p149 = scmp.eq.s32.totalorder %s31, 0
      %p150 = por %p148, %p149
      %p151 = scmp.ne.s32.totalorder %s139, %s140
      %p152 = scmp.eq.s32.totalorder %s32, 7
      %p153 = por %p151, %p152
      %p155 = scmp.ne.s32.totalorder %s140, %s154
      %p156 = scmp.eq.s32.totalorder %s32, 0
      %p157 = por %p155, %p156
      %s159 = sadd.s32 %s158, 1
      %p162 = scmp.eq.s32.totalorder %s26, 7
      %p163 = scmp.ne.s32.totalorder %s158, %s160
      %p164 = scmp.eq.s32.totalorder %s26, 0
      %p165 = por %p163, %p164
      %p166 = scmp.ne.s32.totalorder %s158, %s160
      %p167 = scmp.eq.s32.totalorder %s31, 7
      %p168 = por %p166, %p167
      %p169 = scmp.ne.s32.totalorder %s160, %s161
      %p170 = scmp.eq.s32.totalorder %s31, 0
      %p171 = por %p169, %p170
      %p172 = scmp.ne.s32.totalorder %s160, %s161
      %p173 = scmp.eq.s32.totalorder %s32, 7
      %p174 = por %p172, %p173
      %p176 = scmp.ne.s32.totalorder %s161, %s175
      %p177 = scmp.eq.s32.totalorder %s32, 0
      %p178 = por %p176, %p177
      %s180 = sadd.s32 %s179, 1
      %p183 = scmp.eq.s32.totalorder %s26, 7
      %p184 = scmp.ne.s32.totalorder %s179, %s181
      %p185 = scmp.eq.s32.totalorder %s26, 0
      %p186 = por %p184, %p185
      %p187 = scmp.ne.s32.totalorder %s179, %s181
      %p188 = scmp.eq.s32.totalorder %s31, 7
      %p189 = por %p187, %p188
      %p190 = scmp.ne.s32.totalorder %s181, %s182
      %p191 = scmp.eq.s32.totalorder %s31, 0
      %p192 = por %p190, %p191
      %p193 = scmp.ne.s32.totalorder %s181, %s182
      %p194 = scmp.eq.s32.totalorder %s32, 7
      %p195 = por %p193, %p194
      %p197 = scmp.ne.s32.totalorder %s182, %s196
      %p198 = scmp.eq.s32.totalorder %s32, 0
      %p199 = por %p197, %p198
      %s201 = sadd.s32 %s200, 1
      %p204 = scmp.eq.s32.totalorder %s26, 7
      %p205 = scmp.ne.s32.totalorder %s200, %s202
      %p206 = scmp.eq.s32.totalorder %s26, 0
      %p207 = por %p205, %p206
      %p208 = scmp.ne.s32.totalorder %s200, %s202
      %p209 = scmp.eq.s32.totalorder %s31, 7
      %p210 = por %p208, %p209
      %p211 = scmp.ne.s32.totalorder %s202, %s203
      %p212 = scmp.eq.s32.totalorder %s31, 0
      %p213 = por %p211, %p212
      %p214 = scmp.ne.s32.totalorder %s202, %s203
      %p215 = scmp.eq.s32.totalorder %s32, 7
      %p216 = por %p214, %p215
      %p218 = scmp.ne.s32.totalorder %s203, %s217
      %p219 = scmp.eq.s32.totalorder %s32, 0
      %p220 = por %p218, %p219
      %s222 = sadd.s32 %s221, 1
      %p225 = scmp.eq.s32.totalorder %s26, 7
      %p226 = scmp.ne.s32.totalorder %s221, %s223
      %p227 = scmp.eq.s32.totalorder %s26, 0
      %p228 = por %p226, %p227
      %p229 = scmp.ne.s32.totalorder %s221, %s223
      %p230 = scmp.eq.s32.totalorder %s31, 7
      %p231 = por %p229, %p230
      %p232 = scmp.ne.s32.totalorder %s223, %s224
      %p233 = scmp.eq.s32.totalorder %s31, 0
      %p234 = por %p232, %p233
      %p235 = scmp.ne.s32.totalorder %s223, %s224
      %p236 = scmp.eq.s32.totalorder %s32, 7
      %p237 = por %p235, %p236
      %p239 = scmp.ne.s32.totalorder %s224, %s238
      %p240 = scmp.eq.s32.totalorder %s32, 0
      %p241 = por %p239, %p240
      %s243 = sadd.s32 %s242, 1
      %p246 = scmp.eq.s32.totalorder %s26, 7
      %p247 = scmp.ne.s32.totalorder %s242, %s244
      %p248 = scmp.eq.s32.totalorder %s26, 0
      %p249 = por %p247, %p248
      %p250 = scmp.ne.s32.totalorder %s242, %s244
      %p251 = scmp.eq.s32.totalorder %s31, 7
      %p252 = por %p250, %p251
      %p253 = scmp.ne.s32.totalorder %s244, %s245
      %p254 = scmp.eq.s32.totalorder %s31, 0
      %p255 = por %p253, %p254
      %p256 = scmp.ne.s32.totalorder %s244, %s245
      %p257 = scmp.eq.s32.totalorder %s32, 7
      %p258 = por %p256, %p257
      %p260 = scmp.ne.s32.totalorder %s245, %s259
      %p261 = scmp.eq.s32.totalorder %s32, 0
      %p262 = por %p260, %p261
      %s264 = sadd.s32 %s263, 1
      %p267 = scmp.eq.s32.totalorder %s26, 7
      %p268 = scmp.ne.s32.totalorder %s263, %s265
      %p269 = scmp.eq.s32.totalorder %s26, 0
      %p270 = por %p268, %p269
      %p271 = scmp.ne.s32.totalorder %s263, %s265
      %p272 = scmp.eq.s32.totalorder %s31, 7
      %p273 = por %p271, %p272
      %p274 = scmp.ne.s32.totalorder %s265, %s266
      %p275 = scmp.eq.s32.totalorder %s31, 0
      %p276 = por %p274, %p275
      %p277 = scmp.ne.s32.totalorder %s265, %s266
      %p278 = scmp.eq.s32.totalorder %s32, 7
      %p279 = por %p277, %p278
      %p281 = scmp.ne.s32.totalorder %s266, %s280
      %p282 = scmp.eq.s32.totalorder %s32, 0
      %p283 = por %p281, %p282
      %s285 = sadd.s32 %s284, 1
      %p288 = scmp.eq.s32.totalorder %s26, 7
      %p289 = scmp.ne.s32.totalorder %s284, %s286
      %p290 = scmp.eq.s32.totalorder %s26, 0
      %p291 = por %p289, %p290
      %p292 = scmp.ne.s32.totalorder %s284, %s286
      %p293 = scmp.eq.s32.totalorder %s31, 7
      %p294 = por %p292, %p293
      %p295 = scmp.ne.s32.totalorder %s286, %s287
      %p296 = scmp.eq.s32.totalorder %s31, 0
      %p297 = por %p295, %p296
      %p298 = scmp.ne.s32.totalorder %s286, %s287
      %p299 = scmp.eq.s32.totalorder %s32, 7
      %p300 = por %p298, %p299
      %p302 = scmp.ne.s32.totalorder %s287, %s301
      %p303 = scmp.eq.s32.totalorder %s32, 0
      %p304 = por %p302, %p303
      %s306 = sadd.s32 %s305, 1
      %p309 = scmp.eq.s32.totalorder %s26, 7
      %p310 = scmp.ne.s32.totalorder %s305, %s307
      %p311 = scmp.eq.s32.totalorder %s26, 0
      %p312 = por %p310, %p311
      %p313 = scmp.ne.s32.totalorder %s305, %s307
      %p314 = scmp.eq.s32.totalorder %s31, 7
      %p315 = por %p313, %p314
      %p316 = scmp.ne.s32.totalorder %s307, %s308
      %p317 = scmp.eq.s32.totalorder %s31, 0
      %p318 = por %p316, %p317
      %p319 = scmp.ne.s32.totalorder %s307, %s308
      %p320 = scmp.eq.s32.totalorder %s32, 7
      %p321 = por %p319, %p320
      %p323 = scmp.ne.s32.totalorder %s308, %s322
      %p324 = scmp.eq.s32.totalorder %s32, 0
      %p325 = por %p323, %p324
      %s326 = ssub.s32 %s33, %s45
      %s327 = ssub.s32 %s34, %s41
      %s328 = sor.u32 %s326, %s327
      %p329 = scmp.eq.s32.totalorder %s328, 0
      %s331 = sadd.s32 %s330, 1
      %s332 = scalar_select %p329, %s330, %s331
      %p335 = pneg %p329
      %p336 = scmp.eq.s32.totalorder %s26, 7
      %p337 = por %p335, %p336
      %p338 = scmp.ne.s32.totalorder %s330, %s333
      %p339 = scmp.eq.s32.totalorder %s26, 0
      %p340 = por %p338, %p339
      %p341 = scmp.ne.s32.totalorder %s330, %s333
      %p342 = scmp.eq.s32.totalorder %s31, 7
      %p343 = por %p341, %p342
      %p344 = scmp.ne.s32.totalorder %s333, %s334
      %p345 = scmp.eq.s32.totalorder %s31, 0
      %p346 = por %p344, %p345
      %p347 = scmp.ne.s32.totalorder %s333, %s334
      %p348 = scmp.eq.s32.totalorder %s32, 7
      %p349 = por %p347, %p348
      %p351 = scmp.ne.s32.totalorder %s334, %s350
      %p352 = scmp.eq.s32.totalorder %s32, 0
      %p353 = por %p351, %p352
      %s354 = ssub.s32 %s33, %s45
      %s355 = ssub.s32 %s34, %s41
      %s356 = sor.u32 %s354, %s355
      %p357 = scmp.eq.s32.totalorder %s356, 0
      %s359 = sadd.s32 %s358, 1
      %s360 = scalar_select %p357, %s358, %s359
      %p363 = pneg %p357
      %p364 = scmp.eq.s32.totalorder %s26, 7
      %p365 = por %p363, %p364
      %p366 = scmp.ne.s32.totalorder %s358, %s361
      %p367 = scmp.eq.s32.totalorder %s26, 0
      %p368 = por %p366, %p367
      %p369 = scmp.ne.s32.totalorder %s358, %s361
      %p370 = scmp.eq.s32.totalorder %s31, 7
      %p371 = por %p369, %p370
      %p372 = scmp.ne.s32.totalorder %s361, %s362
      %p373 = scmp.eq.s32.totalorder %s31, 0
      %p374 = por %p372, %p373
      %p375 = scmp.ne.s32.totalorder %s361, %s362
      %p376 = scmp.eq.s32.totalorder %s32, 7
      %p377 = por %p375, %p376
      %p379 = scmp.ne.s32.totalorder %s362, %s378
      %p380 = scmp.eq.s32.totalorder %s32, 0
      %p381 = por %p379, %p380
      %s382 = ssub.s32 %s33, %s45
      %s383 = ssub.s32 %s34, %s41
      %s384 = sor.u32 %s382, %s383
      %p385 = scmp.eq.s32.totalorder %s384, 0
      %s387 = sadd.s32 %s386, 1
      %s388 = scalar_select %p385, %s386, %s387
      %p391 = pneg %p385
      %p392 = scmp.eq.s32.totalorder %s26, 7
      %p393 = por %p391, %p392
      %p394 = scmp.ne.s32.totalorder %s386, %s389
      %p395 = scmp.eq.s32.totalorder %s26, 0
      %p396 = por %p394, %p395
      %p397 = scmp.ne.s32.totalorder %s386, %s389
      %p398 = scmp.eq.s32.totalorder %s31, 7
      %p399 = por %p397, %p398
      %p400 = scmp.ne.s32.totalorder %s389, %s390
      %p401 = scmp.eq.s32.totalorder %s31, 0
      %p402 = por %p400, %p401
      %p403 = scmp.ne.s32.totalorder %s389, %s390
      %p404 = scmp.eq.s32.totalorder %s32, 7
      %p405 = por %p403, %p404
      %p407 = scmp.ne.s32.totalorder %s390, %s406
      %p408 = scmp.eq.s32.totalorder %s32, 0
      %p409 = por %p407, %p408
      %p410 = scmp.le.s32.totalorder 1, %s26
      %p411 = scmp.lt.s32.totalorder %s26, 9
      %p412 = pnand %p410, %p411
      %p413 = pneg %p412
      // Predicated region
      $region9: #{tpu_custom_call.1} parent=5 // pred_check
        _
      $region10: #{tpu_custom_call.1} parent=5 // pred_check_branch
        %415 = sbr.rel (%p412) target = $region12
      $region11: #{tpu_custom_call.1} parent=5 // pred_region
        %s416 = ssub.s32 %s26, 1
        // Predicated region
        $region13: #{tpu_custom_call.1} parent=11 // pred_check
          %p417 = pneg %p59
        $region14: #{tpu_custom_call.1} parent=11 // pred_check_branch
          %419 = sbr.rel (%p417) target = $region16
        $region15: #{tpu_custom_call.1} parent=11 // pred_region
          %s421 = ssub.s32 16, 16
          %422 = vsyncadd [#allocation4], %s421
          %s424 = sshll.u32 %s0, 4
          %s425 = int_to_ptr.vmem [resolvable:$true] %s424
          %427 = dma.vmem_to_smem %s425, 16, [#allocation2], [#allocation4]
        $region16: #{tpu_custom_call.1} parent=11 // pred_fallthru
          _
        // Predicated region
        $region17: #{tpu_custom_call.1} parent=11 // pred_check
          %p428 = pneg %p80
        $region18: #{tpu_custom_call.1} parent=11 // pred_check_branch
          %430 = sbr.rel (%p428) target = $region20
        $region19: #{tpu_custom_call.1} parent=11 // pred_region
          _
        $region20: #{tpu_custom_call.1} parent=11 // pred_fallthru
          _
        // Predicated region
        $region21: #{tpu_custom_call.1} parent=11 // pred_check
          %p431 = pneg %p129
        $region22: #{tpu_custom_call.1} parent=11 // pred_check_branch
          %433 = sbr.rel (%p431) target = $region24
        $region23: #{tpu_custom_call.1} parent=11 // pred_region
          _
        $region24: #{tpu_custom_call.1} parent=11 // pred_fallthru
          _
        // Predicated region
        $region25: #{tpu_custom_call.1} parent=11 // pred_check
          %p434 = pneg %p150
        $region26: #{tpu_custom_call.1} parent=11 // pred_check_branch
          %436 = sbr.rel (%p434) target = $region28
        $region27: #{tpu_custom_call.1} parent=11 // pred_region
          _
        $region28: #{tpu_custom_call.1} parent=11 // pred_fallthru
          _
        // Predicated region
        $region29: #{tpu_custom_call.1} parent=11 // pred_check
          %p437 = pneg %p171
        $region30: #{tpu_custom_call.1} parent=11 // pred_check_branch
          %439 = sbr.rel (%p437) target = $region32
        $region31: #{tpu_custom_call.1} parent=11 // pred_region
          _
        $region32: #{tpu_custom_call.1} parent=11 // pred_fallthru
          _
        // Predicated region
        $region33: #{tpu_custom_call.1} parent=11 // pred_check
          %p440 = pneg %p192
        $region34: #{tpu_custom_call.1} parent=11 // pred_check_branch
          %442 = sbr.rel (%p440) target = $region36
        $region35: #{tpu_custom_call.1} parent=11 // pred_region
          _
        $region36: #{tpu_custom_call.1} parent=11 // pred_fallthru
          _
        // Predicated region
        $region37: #{tpu_custom_call.1} parent=11 // pred_check
          %p443 = pneg %p213
        $region38: #{tpu_custom_call.1} parent=11 // pred_check_branch
          %445 = sbr.rel (%p443) target = $region40
        $region39: #{tpu_custom_call.1} parent=11 // pred_region
          _
        $region40: #{tpu_custom_call.1} parent=11 // pred_fallthru
          _
        // Predicated region
        $region41: #{tpu_custom_call.1} parent=11 // pred_check
          %p446 = pneg %p234
        $region42: #{tpu_custom_call.1} parent=11 // pred_check_branch
          %448 = sbr.rel (%p446) target = $region44
        $region43: #{tpu_custom_call.1} parent=11 // pred_region
          _
        $region44: #{tpu_custom_call.1} parent=11 // pred_fallthru
          _
        // Predicated region
        $region45: #{tpu_custom_call.1} parent=11 // pred_check
          %p449 = pneg %p255
        $region46: #{tpu_custom_call.1} parent=11 // pred_check_branch
          %451 = sbr.rel (%p449) target = $region48
        $region47: #{tpu_custom_call.1} parent=11 // pred_region
          _
        $region48: #{tpu_custom_call.1} parent=11 // pred_fallthru
          _
        // Predicated region
        $region49: #{tpu_custom_call.1} parent=11 // pred_check
          %p452 = pneg %p276
        $region50: #{tpu_custom_call.1} parent=11 // pred_check_branch
          %454 = sbr.rel (%p452) target = $region52
        $region51: #{tpu_custom_call.1} parent=11 // pred_region
          _
        $region52: #{tpu_custom_call.1} parent=11 // pred_fallthru
          _
        // Predicated region
        $region53: #{tpu_custom_call.1} parent=11 // pred_check
          %p455 = pneg %p297
        $region54: #{tpu_custom_call.1} parent=11 // pred_check_branch
          %457 = sbr.rel (%p455) target = $region56
        $region55: #{tpu_custom_call.1} parent=11 // pred_region
          _
        $region56: #{tpu_custom_call.1} parent=11 // pred_fallthru
          _
        // Predicated region
        $region57: #{tpu_custom_call.1} parent=11 // pred_check
          %p458 = pneg %p318
        $region58: #{tpu_custom_call.1} parent=11 // pred_check_branch
          %460 = sbr.rel (%p458) target = $region60
        $region59: #{tpu_custom_call.1} parent=11 // pred_region
          _
        $region60: #{tpu_custom_call.1} parent=11 // pred_fallthru
          _
      $region12: #{tpu_custom_call.1} parent=5 // pred_fallthru
        _
      %p461 = scmp.lt.s32.totalorder %s26, 8
      // Predicated region
      $region61: #{tpu_custom_call.1} parent=5 // pred_check
        %p462 = pneg %p461
      $region62: #{tpu_custom_call.1} parent=5 // pred_check_branch
        %464 = sbr.rel (%p462) target = $region64
      $region63: #{tpu_custom_call.1} parent=5 // pred_region
        // Predicated region
        $region65: #{tpu_custom_call.1} parent=63 // pred_check
          %p465 = pneg %p102
        $region66: #{tpu_custom_call.1} parent=63 // pred_check_branch
          %467 = sbr.rel (%p465) target = $region68
        $region67: #{tpu_custom_call.1} parent=63 // pred_region
          %s468 = smul.u32 2, %s34
          %p469 = scmp.lt.s32.totalorder %s33, 7
          %s470 = scalar_select %p469, %s33, 7
          %p471 = scmp.lt.s32.totalorder %s468, 1
          %s472 = scalar_select %p471, %s468, 1
          %s473 = smul.addr %s470, 2
          %s474 = sadd.s32 %s472, %s473
          %s475 = smul.addr %s474, 4
          %s476 = scalar_lea.vmem %s2, %s475
          %s477 = smul.u32 2, %s34
        $region68: #{tpu_custom_call.1} parent=63 // pred_fallthru
          _
      $region64: #{tpu_custom_call.1} parent=5 // pred_fallthru
        _
      %p478 = scmp.le.s32.totalorder 1, %s26
      %p479 = scmp.lt.s32.totalorder %s26, 9
      %p480 = pnand %p478, %p479
      %p481 = pneg %p480
      // Predicated region
      $region69: #{tpu_custom_call.1} parent=5 // pred_check
        _
      $region70: #{tpu_custom_call.1} parent=5 // pred_check_branch
        %483 = sbr.rel (%p480) target = $region72
      $region71: #{tpu_custom_call.1} parent=5 // pred_region
        %s484 = ssub.s32 %s26, 1
        // Predicated region
        $region73: #{tpu_custom_call.1} parent=71 // pred_check
          %p485 = pneg %p59
        $region74: #{tpu_custom_call.1} parent=71 // pred_check_branch
          %487 = sbr.rel (%p485) target = $region76
        $region75: #{tpu_custom_call.1} parent=71 // pred_region
          %488 = dma.done [#allocation4], 16
        $region76: #{tpu_custom_call.1} parent=71 // pred_fallthru
          _
        %489 = sfence
        %p490 = pneg %p59
        %p491 = pneg %p56
        %p492 = pneg %p80
        %p493 = pneg %p77
        %s494 = smul.u32 2, %s36
        %p495 = scmp.lt.s32.totalorder %s35, 7
        %s496 = scalar_select %p495, %s35, 7
        %p497 = scmp.lt.s32.totalorder %s494, 1
        %s498 = scalar_select %p497, %s494, 1
        %s499 = smul.addr %s496, 2
        %s500 = sadd.s32 %s498, %s499
        %s501 = smul.addr %s500, 4
        %s502 = scalar_lea.vmem %s2, %s501
        %p503 = pneg %p108
        %p504 = pneg %p105
        %p505 = pneg %p129
        %p506 = pneg %p126
        %p507 = pneg %p150
        %p508 = pneg %p147
        %p509 = pneg %p171
        %p510 = pneg %p168
        %p511 = pneg %p192
        %p512 = pneg %p189
        %p513 = pneg %p213
        %p514 = pneg %p210
        %p515 = pneg %p234
        %p516 = pneg %p231
        %p517 = pneg %p255
        %p518 = pneg %p252
        %p519 = pneg %p276
        %p520 = pneg %p273
        %p521 = pneg %p297
        %p522 = pneg %p294
        %p523 = pneg %p318
        %p524 = pneg %p315
        %p525 = pneg %p346
        %p526 = pneg %p343
        %s527 = smul.u32 2, %s36
        %p528 = scmp.lt.s32.totalorder %s35, 7
        %s529 = scalar_select %p528, %s35, 7
        %p530 = scmp.lt.s32.totalorder %s527, 1
        %s531 = scalar_select %p530, %s527, 1
        %s532 = smul.addr %s529, 2
        %s533 = sadd.s32 %s531, %s532
        %s534 = smul.addr %s533, 4
        %s535 = scalar_lea.vmem %s13, %s534
        %p536 = pneg %p374
        %p537 = pneg %p371
        %p538 = scmp.lt.s32.totalorder %s35, 7
        %s539 = scalar_select %p538, %s35, 7
        %p540 = scmp.lt.s32.totalorder %s36, 0
        %s541 = scalar_select %p540, %s36, 0
        %s542 = smul.addr %s541, 4
        %s543 = smul.addr %s539, 4
        %s544 = sadd.s32 %s542, %s543
        %s545 = smul.addr %s544, 8
        %s546 = scalar_lea.vmem %s14, %s545
        %p547 = pneg %p402
        %p548 = pneg %p399
        %s549 = sand.u32 %s389, 1
        %s550 = scalar_lea.sflag [#allocation3], %s549
        %s551 = sand.u32 %s389, 1
        %s552 = smul.addr %s551, 2
        %s553 = scalar_lea.vmem [#allocation5], %s552
        %s554 = smul.u32 2, %s36
        %p555 = scmp.lt.s32.totalorder %s35, 7
        %s556 = scalar_select %p555, %s35, 7
        %p557 = scmp.lt.s32.totalorder %s554, 1
        %s558 = scalar_select %p557, %s554, 1
        %s559 = smul.addr %s556, 2
        %s560 = sadd.s32 %s558, %s559
        %s561 = smul.addr %s560, 4
        %s562 = scalar_lea.vmem %s2, %s561
        %s563 = smul.u32 2, %s36
        %s564 = smul.u32 2, %s36
        %p565 = scmp.lt.s32.totalorder %s35, 7
        %s566 = scalar_select %p565, %s35, 7
        %p567 = scmp.lt.s32.totalorder %s564, 1
        %s568 = scalar_select %p567, %s564, 1
        %s569 = smul.addr %s566, 2
        %s570 = sadd.s32 %s568, %s569
        %s571 = smul.addr %s570, 4
        %s572 = scalar_lea.vmem %s13, %s571
        %s573 = smul.u32 2, %s36
        %p574 = scmp.lt.s32.totalorder %s35, 7
        %s575 = scalar_select %p574, %s35, 7
        %p576 = scmp.lt.s32.totalorder %s36, 0
        %s577 = scalar_select %p576, %s36, 0
        %s578 = smul.addr %s577, 4
        %s579 = smul.addr %s575, 4
        %s580 = sadd.s32 %s578, %s579
        %s581 = smul.addr %s580, 8
        %s582 = scalar_lea.vmem %s14, %s581
        %v583 = vld [vmem:[%s562] sm:$0x77]
        %s584 = sld [smem:[#allocation2]]
        %s585 = sld [smem:[#allocation2 + $0x1]]
        %v586 = vld [vmem:[%s3] sm:$0xff]
        %v587 = vld [vmem:[%s3 + $0x8] sm:$0xff]
        %v588 = vld [vmem:[%s3 + $0x10] sm:$0xff]
        %v589 = vld [vmem:[%s3 + $0x18] sm:$0xff]
        %v590 = vld [vmem:[%s4] sm:$0xff]
        %v591 = vld [vmem:[%s4 + $0x8] sm:$0xff]
        %v592 = vld [vmem:[%s4 + $0x10] sm:$0xff]
        %v593 = vld [vmem:[%s4 + $0x18] sm:$0xff]
        %595 = vset.pattern.permute.xlu0 0
        %596 = vperm.xlu0 %595, %v590
        %v597 = vpop.permute.xlu0 %596
        %600 = vset.pattern.permute.xlu0 0
        %601 = vperm.xlu0 %600, %v591
        %v602 = vpop.permute.xlu0 %601
        %605 = vset.pattern.permute.xlu0 0
        %606 = vperm.xlu0 %605, %v592
        %v607 = vpop.permute.xlu0 %606
        %610 = vset.pattern.permute.xlu0 0
        %611 = vperm.xlu0 %610, %v593
        %v612 = vpop.permute.xlu0 %611
        %v615 = vcombine.high %v583, %v583
        %vm616 = vcmask 23552
        %v618 = vsel %vm616, %v586, 0
        %v621 = vsel %vm616, %v587, 0
        %v624 = vsel %vm616, %v588, 0
        %v627 = vsel %vm616, %v589, 0
        %vm629 = vcmask 1042432
        %v630 = vsel %vm629, %v583, 0
        %v632 = vsel %vm629, %v615, 0
        %634 = vmatprep.subr.mxu0 0.0
        %635 = vmatpush1.msra.mxu0 0.0
        %636 = vmatprep.subr.mxu0 0.0
        %637 = vmatpush1.msra.mxu0 0.0
        %638 = vmatprep.subr.mxu0 0.0
        %639 = vmatpush1.msra.mxu0 0.0
        %640 = vmatprep.subr.mxu0 0.0
        %641 = vmatpush1.msra.mxu0 0.0
        %642 = vmatprep.subr.mxu0 0.0
        %643 = vmatpush1.msra.mxu0 0.0
        %644 = vmatprep.subr.mxu0 0.0
        %645 = vmatpush1.msra.mxu0 0.0
        %646 = vmatprep.subr.mxu0 0.0
        %647 = vmatpush1.msra.mxu0 0.0
        %648 = vmatprep.subr.mxu0 0.0
        %649 = vmatpush1.msra.mxu0 0.0
        %650 = vmatprep.subr.mxu0 0.0
        %651 = vmatpush1.msra.mxu0 0.0
        %652 = vmatprep.subr.mxu0 0.0
        %653 = vmatpush1.msra.mxu0 0.0
        %654 = vmatprep.subr.mxu0 0.0
        %655 = vmatpush1.msra.mxu0 0.0
        %656 = vmatprep.subr.mxu0 0.0
        %657 = vmatpush1.msra.mxu0 0.0
        %658 = vmatprep.subr.mxu0 0.0
        %659 = vmatpush1.msra.mxu0 0.0
        %660 = vmatprep.subr.mxu0 0.0
        %661 = vmatpush1.msra.mxu0 0.0
        %662 = vmatprep.subr.mxu0 0.0
        %663 = vmatpush1.msra.mxu0 0.0
        %664 = vmatprep.subr.mxu0 %v632
        %665 = vmatpush1.msra.mxu0 %v630
        %666 = vmatprep.subr.mxu0 0.0
        %667 = vmatpush2.msra.mxu0 0.0
        %668 = vmatprep.subr.mxu0 0.0
        %669 = vmatpush2.msra.mxu0 0.0
        %670 = vmatprep.subr.mxu0 0.0
        %671 = vmatpush2.msra.mxu0 0.0
        %672 = vmatprep.subr.mxu0 0.0
        %673 = vmatpush2.msra.mxu0 0.0
        %674 = vmatprep.subr.mxu0 0.0
        %675 = vmatpush2.msra.mxu0 0.0
        %676 = vmatprep.subr.mxu0 0.0
        %677 = vmatpush2.msra.mxu0 0.0
        %678 = vmatprep.subr.mxu0 0.0
        %679 = vmatpush2.msra.mxu0 0.0
        %680 = vmatprep.subr.mxu0 0.0
        %681 = vmatpush2.msra.mxu0 0.0
        %682 = vmatprep.subr.mxu0 0.0
        %683 = vmatpush2.msra.mxu0 0.0
        %684 = vmatprep.subr.mxu0 0.0
        %685 = vmatpush2.msra.mxu0 0.0
        %686 = vmatprep.subr.mxu0 0.0
        %687 = vmatpush2.msra.mxu0 0.0
        %688 = vmatprep.subr.mxu0 0.0
        %689 = vmatpush2.msra.mxu0 0.0
        %690 = vmatprep.subr.mxu0 0.0
        %691 = vmatpush2.msra.mxu0 0.0
        %692 = vmatprep.subr.mxu0 0.0
        %693 = vmatpush2.msra.mxu0 0.0
        %694 = vmatprep.subr.mxu0 0.0
        %695 = vmatpush2.msra.mxu0 0.0
        %696 = vmatprep.subr.mxu0 0.0
        %697 = vmatpush2.msra.mxu0 0.0
        %698 = vmatprep.mubr.f32.mxu0 0.0
        %699 = vmatmul.mubr.f32.gmra.mxu0 %v618
        %v700 = vpop.f32.mrf.mxu0
        %v701 = vadd.f32 %v597, %v700
        %v702 = vpop.f32.mrf.mxu0
        %v703 = vadd.f32 %v597, %v702
        %704 = vmatprep.mubr.f32.mxu0 0.0
        %705 = vmatmul.mubr.f32.gmra.mxu0 %v621
        %v706 = vpop.f32.mrf.mxu0
        %v707 = vadd.f32 %v602, %v706
        %v708 = vpop.f32.mrf.mxu0
        %v709 = vadd.f32 %v602, %v708
        %710 = vmatprep.mubr.f32.mxu0 0.0
        %711 = vmatmul.mubr.f32.gmra.mxu0 %v624
        %v712 = vpop.f32.mrf.mxu0
        %v713 = vadd.f32 %v607, %v712
        %v714 = vpop.f32.mrf.mxu0
        %v715 = vadd.f32 %v607, %v714
        %716 = vmatprep.mubr.f32.mxu0 0.0
        %717 = vmatmul.mubr.f32.gmra.mxu0 %v627
        %v718 = vpop.f32.mrf.mxu0
        %v719 = vadd.f32 %v612, %v718
        %v720 = vpop.f32.mrf.mxu0
        %v721 = vadd.f32 %v612, %v720
        %722 = vdwg.mxu0
        %v723 = vmax.f32 %v701, 0.0
        %v724 = vmax.f32 %v703, 0.0
        %v725 = vmax.f32 %v707, 0.0
        %v726 = vmax.f32 %v709, 0.0
        %v727 = vmax.f32 %v713, 0.0
        %v728 = vmax.f32 %v715, 0.0
        %v729 = vmax.f32 %v719, 0.0
        %v730 = vmax.f32 %v721, 0.0
        %v731 = vld [vmem:[%s5] sm:$0x7]
        %v732 = vld [vmem:[%s6] sm:$0x7]
        %734 = vset.pattern.permute.xlu0 0
        %735 = vperm.xlu0 %734, %v732
        %v736 = vpop.permute.xlu0 %735
        %vm738 = vcmask 261120
        %v740 = vsel %vm738, %v731, 0
        %742 = vmatprep.subr.mxu0 0.0
        %743 = vmatpush1.msra.mxu0 0.0
        %744 = vmatprep.subr.mxu0 0.0
        %745 = vmatpush1.msra.mxu0 0.0
        %746 = vmatprep.subr.mxu0 0.0
        %747 = vmatpush1.msra.mxu0 0.0
        %748 = vmatprep.subr.mxu0 0.0
        %749 = vmatpush1.msra.mxu0 0.0
        %750 = vmatprep.subr.mxu0 0.0
        %751 = vmatpush1.msra.mxu0 0.0
        %752 = vmatprep.subr.mxu0 0.0
        %753 = vmatpush1.msra.mxu0 0.0
        %754 = vmatprep.subr.mxu0 0.0
        %755 = vmatpush1.msra.mxu0 0.0
        %756 = vmatprep.subr.mxu0 0.0
        %757 = vmatpush1.msra.mxu0 0.0
        %758 = vmatprep.subr.mxu0 0.0
        %759 = vmatpush1.msra.mxu0 0.0
        %760 = vmatprep.subr.mxu0 0.0
        %761 = vmatpush1.msra.mxu0 0.0
        %762 = vmatprep.subr.mxu0 0.0
        %763 = vmatpush1.msra.mxu0 0.0
        %764 = vmatprep.subr.mxu0 0.0
        %765 = vmatpush1.msra.mxu0 0.0
        %766 = vmatprep.subr.mxu0 %v730
        %767 = vmatpush1.msra.mxu0 %v729
        %768 = vmatprep.subr.mxu0 %v728
        %769 = vmatpush1.msra.mxu0 %v727
        %770 = vmatprep.subr.mxu0 %v726
        %771 = vmatpush1.msra.mxu0 %v725
        %772 = vmatprep.subr.mxu0 %v724
        %773 = vmatpush1.msra.mxu0 %v723
        %774 = vmatprep.subr.mxu0 0.0
        %775 = vmatpush2.msra.mxu0 0.0
        %776 = vmatprep.subr.mxu0 0.0
        %777 = vmatpush2.msra.mxu0 0.0
        %778 = vmatprep.subr.mxu0 0.0
        %779 = vmatpush2.msra.mxu0 0.0
        %780 = vmatprep.subr.mxu0 0.0
        %781 = vmatpush2.msra.mxu0 0.0
        %782 = vmatprep.subr.mxu0 0.0
        %783 = vmatpush2.msra.mxu0 0.0
        %784 = vmatprep.subr.mxu0 0.0
        %785 = vmatpush2.msra.mxu0 0.0
        %786 = vmatprep.subr.mxu0 0.0
        %787 = vmatpush2.msra.mxu0 0.0
        %788 = vmatprep.subr.mxu0 0.0
        %789 = vmatpush2.msra.mxu0 0.0
        %790 = vmatprep.subr.mxu0 0.0
        %791 = vmatpush2.msra.mxu0 0.0
        %792 = vmatprep.subr.mxu0 0.0
        %793 = vmatpush2.msra.mxu0 0.0
        %794 = vmatprep.subr.mxu0 0.0
        %795 = vmatpush2.msra.mxu0 0.0
        %796 = vmatprep.subr.mxu0 0.0
        %797 = vmatpush2.msra.mxu0 0.0
        %798 = vmatprep.subr.mxu0 0.0
        %799 = vmatpush2.msra.mxu0 0.0
        %800 = vmatprep.subr.mxu0 0.0
        %801 = vmatpush2.msra.mxu0 0.0
        %802 = vmatprep.subr.mxu0 0.0
        %803 = vmatpush2.msra.mxu0 0.0
        %804 = vmatprep.subr.mxu0 0.0
        %805 = vmatpush2.msra.mxu0 0.0
        %806 = vmatprep.mubr.f32.mxu0 0.0
        %807 = vmatmul.mubr.f32.gmra.mxu0 %v740
        %v808 = vpop.f32.mrf.mxu0
        %v809 = vadd.f32 %v736, %v808
        %v810 = vpop.f32.mrf.mxu0
        %v811 = vadd.f32 %v736, %v810
        %812 = vdwg.mxu0
        %v814 = vadd.f32 %v809, %v583
        %v815 = vadd.f32 %v811, %v615
        %v816 = vld [vmem:[%s1] sm:$0x7]
        %818 = vset.pattern.permute.xlu0 0
        %819 = vperm.xlu0 %818, %v816
        %v820 = vpop.permute.xlu0 %819
        %v822 = vmul.f32 %v814, %v820
        %v823 = vmul.f32 %v815, %v820
        %v824 = vld [vmem:[%s7] sm:$0xff]
        %v825 = vld [vmem:[%s7 + $0x8] sm:$0xff]
        %v826 = vld [vmem:[%s7 + $0x10] sm:$0xff]
        %v827 = vld [vmem:[%s7 + $0x18] sm:$0xff]
        %v828 = vld [vmem:[%s8] sm:$0xff]
        %v829 = vld [vmem:[%s8 + $0x8] sm:$0xff]
        %v830 = vld [vmem:[%s8 + $0x10] sm:$0xff]
        %v831 = vld [vmem:[%s8 + $0x18] sm:$0xff]
        %833 = vset.pattern.permute.xlu0 0
        %834 = vperm.xlu0 %833, %v828
        %v835 = vpop.permute.xlu0 %834
        %838 = vset.pattern.permute.xlu0 0
        %839 = vperm.xlu0 %838, %v829
        %v840 = vpop.permute.xlu0 %839
        %843 = vset.pattern.permute.xlu0 0
        %844 = vperm.xlu0 %843, %v830
        %v845 = vpop.permute.xlu0 %844
        %848 = vset.pattern.permute.xlu0 0
        %849 = vperm.xlu0 %848, %v831
        %v850 = vpop.permute.xlu0 %849
        %v853 = vsel %vm616, %v824, 0
        %v856 = vsel %vm616, %v825, 0
        %v859 = vsel %vm616, %v826, 0
        %v862 = vsel %vm616, %v827, 0
        %v865 = vsel %vm629, %v822, 0
        %v868 = vsel %vm629, %v823, 0
        %870 = vmatprep.subr.mxu0 0.0
        %871 = vmatpush1.msra.mxu0 0.0
        %872 = vmatprep.subr.mxu0 0.0
        %873 = vmatpush1.msra.mxu0 0.0
        %874 = vmatprep.subr.mxu0 0.0
        %875 = vmatpush1.msra.mxu0 0.0
        %876 = vmatprep.subr.mxu0 0.0
        %877 = vmatpush1.msra.mxu0 0.0
        %878 = vmatprep.subr.mxu0 0.0
        %879 = vmatpush1.msra.mxu0 0.0
        %880 = vmatprep.subr.mxu0 0.0
        %881 = vmatpush1.msra.mxu0 0.0
        %882 = vmatprep.subr.mxu0 0.0
        %883 = vmatpush1.msra.mxu0 0.0
        %884 = vmatprep.subr.mxu0 0.0
        %885 = vmatpush1.msra.mxu0 0.0
        %886 = vmatprep.subr.mxu0 0.0
        %887 = vmatpush1.msra.mxu0 0.0
        %888 = vmatprep.subr.mxu0 0.0
        %889 = vmatpush1.msra.mxu0 0.0
        %890 = vmatprep.subr.mxu0 0.0
        %891 = vmatpush1.msra.mxu0 0.0
        %892 = vmatprep.subr.mxu0 0.0
        %893 = vmatpush1.msra.mxu0 0.0
        %894 = vmatprep.subr.mxu0 0.0
        %895 = vmatpush1.msra.mxu0 0.0
        %896 = vmatprep.subr.mxu0 0.0
        %897 = vmatpush1.msra.mxu0 0.0
        %898 = vmatprep.subr.mxu0 0.0
        %899 = vmatpush1.msra.mxu0 0.0
        %900 = vmatprep.subr.mxu0 %v868
        %901 = vmatpush1.msra.mxu0 %v865
        %902 = vmatprep.subr.mxu0 0.0
        %903 = vmatpush2.msra.mxu0 0.0
        %904 = vmatprep.subr.mxu0 0.0
        %905 = vmatpush2.msra.mxu0 0.0
        %906 = vmatprep.subr.mxu0 0.0
        %907 = vmatpush2.msra.mxu0 0.0
        %908 = vmatprep.subr.mxu0 0.0
        %909 = vmatpush2.msra.mxu0 0.0
        %910 = vmatprep.subr.mxu0 0.0
        %911 = vmatpush2.msra.mxu0 0.0
        %912 = vmatprep.subr.mxu0 0.0
        %913 = vmatpush2.msra.mxu0 0.0
        %914 = vmatprep.subr.mxu0 0.0
        %915 = vmatpush2.msra.mxu0 0.0
        %916 = vmatprep.subr.mxu0 0.0
        %917 = vmatpush2.msra.mxu0 0.0
        %918 = vmatprep.subr.mxu0 0.0
        %919 = vmatpush2.msra.mxu0 0.0
        %920 = vmatprep.subr.mxu0 0.0
        %921 = vmatpush2.msra.mxu0 0.0
        %922 = vmatprep.subr.mxu0 0.0
        %923 = vmatpush2.msra.mxu0 0.0
        %924 = vmatprep.subr.mxu0 0.0
        %925 = vmatpush2.msra.mxu0 0.0
        %926 = vmatprep.subr.mxu0 0.0
        %927 = vmatpush2.msra.mxu0 0.0
        %928 = vmatprep.subr.mxu0 0.0
        %929 = vmatpush2.msra.mxu0 0.0
        %930 = vmatprep.subr.mxu0 0.0
        %931 = vmatpush2.msra.mxu0 0.0
        %932 = vmatprep.subr.mxu0 0.0
        %933 = vmatpush2.msra.mxu0 0.0
        %934 = vmatprep.mubr.f32.mxu0 0.0
        %935 = vmatmul.mubr.f32.gmra.mxu0 %v853
        %v936 = vpop.f32.mrf.mxu0
        %v937 = vadd.f32 %v835, %v936
        %v938 = vpop.f32.mrf.mxu0
        %v939 = vadd.f32 %v835, %v938
        %940 = vmatprep.mubr.f32.mxu0 0.0
        %941 = vmatmul.mubr.f32.gmra.mxu0 %v856
        %v942 = vpop.f32.mrf.mxu0
        %v943 = vadd.f32 %v840, %v942
        %v944 = vpop.f32.mrf.mxu0
        %v945 = vadd.f32 %v840, %v944
        %946 = vmatprep.mubr.f32.mxu0 0.0
        %947 = vmatmul.mubr.f32.gmra.mxu0 %v859
        %v948 = vpop.f32.mrf.mxu0
        %v949 = vadd.f32 %v845, %v948
        %v950 = vpop.f32.mrf.mxu0
        %v951 = vadd.f32 %v845, %v950
        %952 = vmatprep.mubr.f32.mxu0 0.0
        %953 = vmatmul.mubr.f32.gmra.mxu0 %v862
        %v954 = vpop.f32.mrf.mxu0
        %v955 = vadd.f32 %v850, %v954
        %v956 = vpop.f32.mrf.mxu0
        %v957 = vadd.f32 %v850, %v956
        %958 = vdwg.mxu0
        %v959 = vmax.f32 %v937, 0.0
        %v960 = vmax.f32 %v939, 0.0
        %v961 = vmax.f32 %v943, 0.0
        %v962 = vmax.f32 %v945, 0.0
        %v963 = vmax.f32 %v949, 0.0
        %v964 = vmax.f32 %v951, 0.0
        %v965 = vmax.f32 %v955, 0.0
        %v966 = vmax.f32 %v957, 0.0
        %v967 = vstv %s585
        %v968 = vmul.f32 %v959, %v967
        %v969 = vmul.f32 %v960, %v967
        %v970 = vmul.f32 %v961, %v967
        %v971 = vmul.f32 %v962, %v967
        %v972 = vmul.f32 %v963, %v967
        %v973 = vmul.f32 %v964, %v967
        %v974 = vmul.f32 %v965, %v967
        %v975 = vmul.f32 %v966, %v967
        %v976 = vround.ne.pseudo %v968
        %v977 = vround.ne.pseudo %v969
        %v978 = vround.ne.pseudo %v970
        %v979 = vround.ne.pseudo %v971
        %v980 = vround.ne.pseudo %v972
        %v981 = vround.ne.pseudo %v973
        %v982 = vround.ne.pseudo %v974
        %v983 = vround.ne.pseudo %v975
        %v984 = vstv %s584
        %v985 = vmul.f32 %v976, %v984
        %v986 = vmul.f32 %v977, %v984
        %v987 = vmul.f32 %v978, %v984
        %v988 = vmul.f32 %v979, %v984
        %v989 = vmul.f32 %v980, %v984
        %v990 = vmul.f32 %v981, %v984
        %v991 = vmul.f32 %v982, %v984
        %v992 = vmul.f32 %v983, %v984
        %v993 = vld [vmem:[%s9] sm:$0x7]
        %v994 = vld [vmem:[%s10] sm:$0x7]
        %996 = vset.pattern.permute.xlu0 0
        %997 = vperm.xlu0 %996, %v994
        %v998 = vpop.permute.xlu0 %997
        %v1001 = vsel %vm738, %v993, 0
        %1003 = vmatprep.subr.mxu0 0.0
        %1004 = vmatpush1.msra.mxu0 0.0
        %1005 = vmatprep.subr.mxu0 0.0
        %1006 = vmatpush1.msra.mxu0 0.0
        %1007 = vmatprep.subr.mxu0 0.0
        %1008 = vmatpush1.msra.mxu0 0.0
        %1009 = vmatprep.subr.mxu0 0.0
        %1010 = vmatpush1.msra.mxu0 0.0
        %1011 = vmatprep.subr.mxu0 0.0
        %1012 = vmatpush1.msra.mxu0 0.0
        %1013 = vmatprep.subr.mxu0 0.0
        %1014 = vmatpush1.msra.mxu0 0.0
        %1015 = vmatprep.subr.mxu0 0.0
        %1016 = vmatpush1.msra.mxu0 0.0
        %1017 = vmatprep.subr.mxu0 0.0
        %1018 = vmatpush1.msra.mxu0 0.0
        %1019 = vmatprep.subr.mxu0 0.0
        %1020 = vmatpush1.msra.mxu0 0.0
        %1021 = vmatprep.subr.mxu0 0.0
        %1022 = vmatpush1.msra.mxu0 0.0
        %1023 = vmatprep.subr.mxu0 0.0
        %1024 = vmatpush1.msra.mxu0 0.0
        %1025 = vmatprep.subr.mxu0 0.0
        %1026 = vmatpush1.msra.mxu0 0.0
        %1027 = vmatprep.subr.mxu0 %v992
        %1028 = vmatpush1.msra.mxu0 %v991
        %1029 = vmatprep.subr.mxu0 %v990
        %1030 = vmatpush1.msra.mxu0 %v989
        %1031 = vmatprep.subr.mxu0 %v988
        %1032 = vmatpush1.msra.mxu0 %v987
        %1033 = vmatprep.subr.mxu0 %v986
        %1034 = vmatpush1.msra.mxu0 %v985
        %1035 = vmatprep.subr.mxu0 0.0
        %1036 = vmatpush2.msra.mxu0 0.0
        %1037 = vmatprep.subr.mxu0 0.0
        %1038 = vmatpush2.msra.mxu0 0.0
        %1039 = vmatprep.subr.mxu0 0.0
        %1040 = vmatpush2.msra.mxu0 0.0
        %1041 = vmatprep.subr.mxu0 0.0
        %1042 = vmatpush2.msra.mxu0 0.0
        %1043 = vmatprep.subr.mxu0 0.0
        %1044 = vmatpush2.msra.mxu0 0.0
        %1045 = vmatprep.subr.mxu0 0.0
        %1046 = vmatpush2.msra.mxu0 0.0
        %1047 = vmatprep.subr.mxu0 0.0
        %1048 = vmatpush2.msra.mxu0 0.0
        %1049 = vmatprep.subr.mxu0 0.0
        %1050 = vmatpush2.msra.mxu0 0.0
        %1051 = vmatprep.subr.mxu0 0.0
        %1052 = vmatpush2.msra.mxu0 0.0
        %1053 = vmatprep.subr.mxu0 0.0
        %1054 = vmatpush2.msra.mxu0 0.0
        %1055 = vmatprep.subr.mxu0 0.0
        %1056 = vmatpush2.msra.mxu0 0.0
        %1057 = vmatprep.subr.mxu0 0.0
        %1058 = vmatpush2.msra.mxu0 0.0
        %1059 = vmatprep.subr.mxu0 0.0
        %1060 = vmatpush2.msra.mxu0 0.0
        %1061 = vmatprep.subr.mxu0 0.0
        %1062 = vmatpush2.msra.mxu0 0.0
        %1063 = vmatprep.subr.mxu0 0.0
        %1064 = vmatpush2.msra.mxu0 0.0
        %1065 = vmatprep.subr.mxu0 0.0
        %1066 = vmatpush2.msra.mxu0 0.0
        %1067 = vmatprep.mubr.f32.mxu0 0.0
        %1068 = vmatmul.mubr.f32.gmra.mxu0 %v1001
        %v1069 = vpop.f32.mrf.mxu0
        %v1070 = vadd.f32 %v998, %v1069
        %v1071 = vpop.f32.mrf.mxu0
        %v1072 = vadd.f32 %v998, %v1071
        %1073 = vdwg.mxu0
        %v1076 = vcombine.low %v1070, %v1072
        %1078 = vst [vmem:[%s572] sm:$0x77] %v1076
        %v1079 = vand.u32 2147483647, %v976
        %v1080 = vand.u32 2147483647, %v977
        %v1081 = vand.u32 2147483647, %v978
        %v1082 = vand.u32 2147483647, %v979
        %v1083 = vand.u32 2147483647, %v980
        %v1084 = vand.u32 2147483647, %v981
        %v1085 = vand.u32 2147483647, %v982
        %v1086 = vand.u32 2147483647, %v983
        %v1087 = vadd.f32 %v1079, 1.0
        %v1088 = vadd.f32 %v1080, 1.0
        %v1089 = vadd.f32 %v1081, 1.0
        %v1090 = vadd.f32 %v1082, 1.0
        %v1091 = vadd.f32 %v1083, 1.0
        %v1092 = vadd.f32 %v1084, 1.0
        %v1093 = vadd.f32 %v1085, 1.0
        %v1094 = vadd.f32 %v1086, 1.0
        %v1095 = vlog2.pop %v1087
        %v1096 = vmul.f32 %v1095, 0.6931472
        %v1097 = vlog2.pop %v1088
        %v1098 = vmul.f32 %v1097, 0.6931472
        %v1099 = vlog2.pop %v1089
        %v1100 = vmul.f32 %v1099, 0.6931472
        %v1101 = vlog2.pop %v1090
        %v1102 = vmul.f32 %v1101, 0.6931472
        %v1103 = vlog2.pop %v1091
        %v1104 = vmul.f32 %v1103, 0.6931472
        %v1105 = vlog2.pop %v1092
        %v1106 = vmul.f32 %v1105, 0.6931472
        %v1107 = vlog2.pop %v1093
        %v1108 = vmul.f32 %v1107, 0.6931472
        %v1109 = vlog2.pop %v1094
        %v1110 = vmul.f32 %v1109, 0.6931472
        %v1111 = vrcp.pop 0.6931472
        %v1112 = vmul.f32 %v1096, %v1111
        %v1113 = vmul.f32 %v1098, %v1111
        %v1114 = vmul.f32 %v1100, %v1111
        %v1115 = vmul.f32 %v1102, %v1111
        %v1116 = vmul.f32 %v1104, %v1111
        %v1117 = vmul.f32 %v1106, %v1111
        %v1118 = vmul.f32 %v1108, %v1111
        %v1119 = vmul.f32 %v1110, %v1111
        %v1120 = vadd.f32 %v1112, %v1114
        %v1121 = vadd.f32 %v1120, %v1116
        %v1122 = vadd.f32 %v1121, %v1118
        %v1123 = vrot.slane %v1122, 4
        %v1124 = vadd.f32 %v1122, %v1123
        %v1125 = vrot.slane %v1124, 2
        %v1126 = vadd.f32 %v1124, %v1125
        %v1127 = vrot.slane %v1126, 1
        %v1128 = vadd.f32 %v1126, %v1127
        %v1129 = vadd.f32 %v1113, %v1115
        %v1130 = vadd.f32 %v1129, %v1117
        %v1131 = vadd.f32 %v1130, %v1119
        %v1132 = vrot.slane %v1131, 4
        %v1133 = vadd.f32 %v1131, %v1132
        %v1134 = vrot.slane %v1133, 2
        %v1135 = vadd.f32 %v1133, %v1134
        %v1136 = vrot.slane %v1135, 1
        %v1137 = vadd.f32 %v1135, %v1136
        %v1140 = vcombine.low %v1128, %v1137
        %v1142 = vunpack.c.l.s4 1966171168
        %v1143 = vunpack.c.0.s8 %v1142
        %v1144 = vlaneseq
        %v1145 = vshrl.u32 %v1144, 7
        %v1146 = vsub.s32 %v1143, %v1145
        %v1147 = vrot.slane %v1140, %v1146
        %v1149 = vunpack.c.l.s4 1966171168
        %v1150 = vunpack.c.0.s8 %v1149
        %v1151 = vlaneseq
        %v1152 = vshrl.u32 %v1151, 7
        %v1153 = vsub.s32 %v1150, %v1152
        %v1154 = vrot.slane %v1147, %v1153
        %v1156 = vlaneseq
        %vm1157 = vcmp.ge.s32.totalorder %v1156, 0
        %vm1158 = vcmp.lt.s32.totalorder %v1156, 256
        %vm1159 = vmand %vm1157, %vm1158
        %1160 = vst.msk [vmem:[%s553] sm:$0x3] %vm1159, %v1154
        %v1161 = vld [vmem:[%s11] sm:$0xff]
        %v1162 = vld [vmem:[%s11 + $0x8] sm:$0xff]
        %v1163 = vld [vmem:[%s11 + $0x10] sm:$0xff]
        %v1164 = vld [vmem:[%s11 + $0x18] sm:$0xff]
        %v1165 = vld [vmem:[%s12] sm:$0xff]
        %v1166 = vld [vmem:[%s12 + $0x8] sm:$0xff]
        %v1167 = vld [vmem:[%s12 + $0x10] sm:$0xff]
        %v1168 = vld [vmem:[%s12 + $0x18] sm:$0xff]
        %1170 = vset.pattern.permute.xlu0 0
        %1171 = vperm.xlu0 %1170, %v1165
        %v1172 = vpop.permute.xlu0 %1171
        %1175 = vset.pattern.permute.xlu0 0
        %1176 = vperm.xlu0 %1175, %v1166
        %v1177 = vpop.permute.xlu0 %1176
        %1180 = vset.pattern.permute.xlu0 0
        %1181 = vperm.xlu0 %1180, %v1167
        %v1182 = vpop.permute.xlu0 %1181
        %1185 = vset.pattern.permute.xlu0 0
        %1186 = vperm.xlu0 %1185, %v1168
        %v1187 = vpop.permute.xlu0 %1186
        %v1190 = vsel %vm616, %v1161, 0
        %v1193 = vsel %vm616, %v1162, 0
        %v1196 = vsel %vm616, %v1163, 0
        %v1199 = vsel %vm616, %v1164, 0
        %v1201 = vsel %vm629, %v1070, 0
        %v1203 = vsel %vm629, %v1072, 0
        %1205 = vmatprep.subr.mxu0 0.0
        %1206 = vmatpush1.msra.mxu0 0.0
        %1207 = vmatprep.subr.mxu0 0.0
        %1208 = vmatpush1.msra.mxu0 0.0
        %1209 = vmatprep.subr.mxu0 0.0
        %1210 = vmatpush1.msra.mxu0 0.0
        %1211 = vmatprep.subr.mxu0 0.0
        %1212 = vmatpush1.msra.mxu0 0.0
        %1213 = vmatprep.subr.mxu0 0.0
        %1214 = vmatpush1.msra.mxu0 0.0
        %1215 = vmatprep.subr.mxu0 0.0
        %1216 = vmatpush1.msra.mxu0 0.0
        %1217 = vmatprep.subr.mxu0 0.0
        %1218 = vmatpush1.msra.mxu0 0.0
        %1219 = vmatprep.subr.mxu0 0.0
        %1220 = vmatpush1.msra.mxu0 0.0
        %1221 = vmatprep.subr.mxu0 0.0
        %1222 = vmatpush1.msra.mxu0 0.0
        %1223 = vmatprep.subr.mxu0 0.0
        %1224 = vmatpush1.msra.mxu0 0.0
        %1225 = vmatprep.subr.mxu0 0.0
        %1226 = vmatpush1.msra.mxu0 0.0
        %1227 = vmatprep.subr.mxu0 0.0
        %1228 = vmatpush1.msra.mxu0 0.0
        %1229 = vmatprep.subr.mxu0 0.0
        %1230 = vmatpush1.msra.mxu0 0.0
        %1231 = vmatprep.subr.mxu0 0.0
        %1232 = vmatpush1.msra.mxu0 0.0
        %1233 = vmatprep.subr.mxu0 0.0
        %1234 = vmatpush1.msra.mxu0 0.0
        %1235 = vmatprep.subr.mxu0 %v1203
        %1236 = vmatpush1.msra.mxu0 %v1201
        %1237 = vmatprep.subr.mxu0 0.0
        %1238 = vmatpush2.msra.mxu0 0.0
        %1239 = vmatprep.subr.mxu0 0.0
        %1240 = vmatpush2.msra.mxu0 0.0
        %1241 = vmatprep.subr.mxu0 0.0
        %1242 = vmatpush2.msra.mxu0 0.0
        %1243 = vmatprep.subr.mxu0 0.0
        %1244 = vmatpush2.msra.mxu0 0.0
        %1245 = vmatprep.subr.mxu0 0.0
        %1246 = vmatpush2.msra.mxu0 0.0
        %1247 = vmatprep.subr.mxu0 0.0
        %1248 = vmatpush2.msra.mxu0 0.0
        %1249 = vmatprep.subr.mxu0 0.0
        %1250 = vmatpush2.msra.mxu0 0.0
        %1251 = vmatprep.subr.mxu0 0.0
        %1252 = vmatpush2.msra.mxu0 0.0
        %1253 = vmatprep.subr.mxu0 0.0
        %1254 = vmatpush2.msra.mxu0 0.0
        %1255 = vmatprep.subr.mxu0 0.0
        %1256 = vmatpush2.msra.mxu0 0.0
        %1257 = vmatprep.subr.mxu0 0.0
        %1258 = vmatpush2.msra.mxu0 0.0
        %1259 = vmatprep.subr.mxu0 0.0
        %1260 = vmatpush2.msra.mxu0 0.0
        %1261 = vmatprep.subr.mxu0 0.0
        %1262 = vmatpush2.msra.mxu0 0.0
        %1263 = vmatprep.subr.mxu0 0.0
        %1264 = vmatpush2.msra.mxu0 0.0
        %1265 = vmatprep.subr.mxu0 0.0
        %1266 = vmatpush2.msra.mxu0 0.0
        %1267 = vmatprep.subr.mxu0 0.0
        %1268 = vmatpush2.msra.mxu0 0.0
        %1269 = vmatprep.mubr.f32.mxu0 0.0
        %1270 = vmatmul.mubr.f32.gmra.mxu0 %v1190
        %v1271 = vpop.f32.mrf.mxu0
        %v1272 = vadd.f32 %v1172, %v1271
        %v1273 = vpop.f32.mrf.mxu0
        %v1274 = vadd.f32 %v1172, %v1273
        %1275 = vmatprep.mubr.f32.mxu0 0.0
        %1276 = vmatmul.mubr.f32.gmra.mxu0 %v1193
        %v1277 = vpop.f32.mrf.mxu0
        %v1278 = vadd.f32 %v1177, %v1277
        %v1279 = vpop.f32.mrf.mxu0
        %v1280 = vadd.f32 %v1177, %v1279
        %1281 = vmatprep.mubr.f32.mxu0 0.0
        %1282 = vmatmul.mubr.f32.gmra.mxu0 %v1196
        %v1283 = vpop.f32.mrf.mxu0
        %v1284 = vadd.f32 %v1182, %v1283
        %v1285 = vpop.f32.mrf.mxu0
        %v1286 = vadd.f32 %v1182, %v1285
        %1287 = vmatprep.mubr.f32.mxu0 0.0
        %1288 = vmatmul.mubr.f32.gmra.mxu0 %v1199
        %v1289 = vpop.f32.mrf.mxu0
        %v1290 = vadd.f32 %v1187, %v1289
        %v1291 = vpop.f32.mrf.mxu0
        %v1292 = vadd.f32 %v1187, %v1291
        %1293 = vdwg.mxu0
        %v1294 = vmax.f32 %v1272, 0.0
        %v1295 = vmax.f32 %v1274, 0.0
        %v1296 = vmax.f32 %v1278, 0.0
        %v1297 = vmax.f32 %v1280, 0.0
        %v1298 = vmax.f32 %v1284, 0.0
        %v1299 = vmax.f32 %v1286, 0.0
        %v1300 = vmax.f32 %v1290, 0.0
        %v1301 = vmax.f32 %v1292, 0.0
        %v1302 = vadd.f32 %v1294, %v1295
        %1303 = vadd.xlane.f32.xlu0 %v1302
        %v1304 = vpop.xlane.xlu0 %1303
        %v1305 = vadd.f32 %v1296, %v1297
        %1306 = vadd.xlane.f32.xlu0 %v1305
        %v1307 = vpop.xlane.xlu0 %1306
        %v1308 = vadd.f32 %v1298, %v1299
        %1309 = vadd.xlane.f32.xlu0 %v1308
        %v1310 = vpop.xlane.xlu0 %1309
        %v1311 = vadd.f32 %v1300, %v1301
        %1312 = vadd.xlane.f32.xlu0 %v1311
        %v1313 = vpop.xlane.xlu0 %1312
        %vm1314 = vcmask 7168
        %1315 = vst.msk [vmem:[%s582] sm:$0xff] %vm1314, %v1304
        %1316 = vst.msk [vmem:[%s582 + $0x8] sm:$0xff] %vm1314, %v1307
        %1317 = vst.msk [vmem:[%s582 + $0x10] sm:$0xff] %vm1314, %v1310
        %1318 = vst.msk [vmem:[%s582 + $0x18] sm:$0xff] %vm1314, %v1313
        %s1319 = smul.u32 2, %s36
        %p1320 = scmp.lt.s32.totalorder %s35, 7
        %s1321 = scalar_select %p1320, %s35, 7
        %p1322 = scmp.lt.s32.totalorder %s1319, 1
        %s1323 = scalar_select %p1322, %s1319, 1
        %s1324 = smul.addr %s1321, 2
        %s1325 = sadd.s32 %s1323, %s1324
        %s1326 = smul.addr %s1325, 4
        %s1327 = scalar_lea.vmem %s13, %s1326
        %p1328 = scmp.lt.s32.totalorder %s35, 7
        %s1329 = scalar_select %p1328, %s35, 7
        %p1330 = scmp.lt.s32.totalorder %s36, 0
        %s1331 = scalar_select %p1330, %s36, 0
        %s1332 = smul.addr %s1331, 4
        %s1333 = smul.addr %s1329, 4
        %s1334 = sadd.s32 %s1332, %s1333
        %s1335 = smul.addr %s1334, 8
        %s1336 = scalar_lea.vmem %s14, %s1335
        %s1337 = sand.u32 %s389, 1
        %s1338 = scalar_lea.sflag [#allocation3], %s1337
        %s1339 = sand.u32 %s389, 1
        %s1340 = smul.addr %s1339, 2
        %s1341 = scalar_lea.vmem [#allocation5], %s1340
        // Predicated region
        $region77: #{tpu_custom_call.1} parent=71 // pred_check
          %p1342 = pneg %p343
        $region78: #{tpu_custom_call.1} parent=71 // pred_check_branch
          %1344 = sbr.rel (%p1342) target = $region80
        $region79: #{tpu_custom_call.1} parent=71 // pred_region
          %s1345 = smul.u32 2, %s36
        $region80: #{tpu_custom_call.1} parent=71 // pred_fallthru
          _
        // Predicated region
        $region81: #{tpu_custom_call.1} parent=71 // pred_check
          %p1346 = pneg %p371
        $region82: #{tpu_custom_call.1} parent=71 // pred_check_branch
          %1348 = sbr.rel (%p1346) target = $region84
        $region83: #{tpu_custom_call.1} parent=71 // pred_region
          _
        $region84: #{tpu_custom_call.1} parent=71 // pred_fallthru
          _
        // Predicated region
        $region85: #{tpu_custom_call.1} parent=71 // pred_check
          %p1349 = pneg %p399
        $region86: #{tpu_custom_call.1} parent=71 // pred_check_branch
          %1351 = sbr.rel (%p1349) target = $region88
        $region87: #{tpu_custom_call.1} parent=71 // pred_region
          %s1353 = ssub.s32 32, 32
          %1354 = vsyncadd %s1338, %s1353
          %s1355 = smul.addr %s36, 2
          %s1356 = smul.addr %s35, 2
          %s1357 = sadd.s32 %s1355, %s1356
          %s1358 = smul.addr %s1357, 16
          %s1359 = scalar_lea.hbm %s15, %s1358
          %s1361 = sshll.u32 %s1341, 4
          %s1362 = int_to_ptr.vmem [resolvable:$true] %s1361
          %1364 = dma.vmem_to_hbm [thread:$0]  %s1362, 32, %s1359, %s1338
        $region88: #{tpu_custom_call.1} parent=71 // pred_fallthru
          _
      $region72: #{tpu_custom_call.1} parent=5 // pred_fallthru
        _
      %p1365 = scmp.le.s32.totalorder 2, %s26
      // Predicated region
      $region89: #{tpu_custom_call.1} parent=5 // pred_check
        %p1366 = pneg %p1365
      $region90: #{tpu_custom_call.1} parent=5 // pred_check_branch
        %1368 = sbr.rel (%p1366) target = $region92
      $region91: #{tpu_custom_call.1} parent=5 // pred_region
        %s1369 = ssub.s32 %s26, 2
        // Predicated region
        $region93: #{tpu_custom_call.1} parent=91 // pred_check
          %p1370 = pneg %p349
        $region94: #{tpu_custom_call.1} parent=91 // pred_check_branch
          %1372 = sbr.rel (%p1370) target = $region96
        $region95: #{tpu_custom_call.1} parent=91 // pred_region
          %s1373 = smul.u32 2, %s38
          %p1374 = scmp.lt.s32.totalorder %s37, 7
          %s1375 = scalar_select %p1374, %s37, 7
          %p1376 = scmp.lt.s32.totalorder %s1373, 1
          %s1377 = scalar_select %p1376, %s1373, 1
          %s1378 = smul.addr %s1375, 2
          %s1379 = sadd.s32 %s1377, %s1378
          %s1380 = smul.addr %s1379, 4
          %s1381 = scalar_lea.vmem %s13, %s1380
        $region96: #{tpu_custom_call.1} parent=91 // pred_fallthru
          _
        // Predicated region
        $region97: #{tpu_custom_call.1} parent=91 // pred_check
          %p1382 = pneg %p377
        $region98: #{tpu_custom_call.1} parent=91 // pred_check_branch
          %1384 = sbr.rel (%p1382) target = $region100
        $region99: #{tpu_custom_call.1} parent=91 // pred_region
          %p1385 = scmp.lt.s32.totalorder %s37, 7
          %s1386 = scalar_select %p1385, %s37, 7
          %p1387 = scmp.lt.s32.totalorder %s38, 0
          %s1388 = scalar_select %p1387, %s38, 0
          %s1389 = smul.addr %s1388, 4
          %s1390 = smul.addr %s1386, 4
          %s1391 = sadd.s32 %s1389, %s1390
          %s1392 = smul.addr %s1391, 8
          %s1393 = scalar_lea.vmem %s14, %s1392
        $region100: #{tpu_custom_call.1} parent=91 // pred_fallthru
          _
        // Predicated region
        $region101: #{tpu_custom_call.1} parent=91 // pred_check
          %p1394 = pneg %p405
        $region102: #{tpu_custom_call.1} parent=91 // pred_check_branch
          %1396 = sbr.rel (%p1394) target = $region104
        $region103: #{tpu_custom_call.1} parent=91 // pred_region
          %s1397 = sand.u32 %s390, 1
          %s1398 = scalar_lea.sflag [#allocation3], %s1397
          %s1399 = sand.u32 %s390, 1
          %s1400 = smul.addr %s1399, 2
          %s1401 = scalar_lea.vmem [#allocation5], %s1400
          %1402 = dma.done %s1398, 32
        $region104: #{tpu_custom_call.1} parent=91 // pred_fallthru
          _
      $region92: #{tpu_custom_call.1} parent=5 // pred_fallthru
        _
    $region6: #{tpu_custom_call.1} parent=1 // loop_footer
      %s30 = sadd.s32 1, %s26
    $region7: #{tpu_custom_call.1} parent=1 // loop_footer_branch
      %25 = sbr.rel target = $region3
    $region8: #{tpu_custom_call.1} parent=1 // loop_exit
      _
    %1403 = vsyncpa [#allocation3], 1
    %s1404 = scalar_lea.sflag [#allocation3], 1
    %1405 = vsyncpa %s1404, 1
    %1406 = vsyncpa [#allocation4], 1
    %s1407 = scalar_lea.sflag [#allocation4], 1
    %1408 = vsyncpa %s1407, 1

</llo_original>
